<compile_context>
chip_gen: v7x
topology: tpu7x:2x2x1
jax: 0.10.0
libtpu: 0.0.40
codegen_flags: <defaults>
</compile_context>

<pallas_src>
import numpy as np
import jax
import jax.numpy as jnp
from jax import lax
from jax.experimental import pallas as pl
from jax.experimental.pallas import tpu as pltpu

# ----------------------- small synthetic shapes -----------------------
N = 32            # number of nodes
F_IN = 16         # data.num_features
HID = 16          # hidden / output width of every layer in the module
NUM_REL = 4       # data.num_relations
NUM_BASES = 30    # RGCNConv num_bases
E_TRAIN = 64      # train_pos_edge_index edges (message-passing graph)
E_POS = 40        # pos_edge_index edges (scored)
E_NEG = 40        # neg_edge_index edges (scored)
E_TOT = E_POS + E_NEG
EPAD = 128        # lane-padded edge count (scores emitted as [1, EPAD])
LANES = 128
TRAIN = True

assert E_TOT <= EPAD

# ---------------- bf16 operand-slab row offsets (slab width = 128 lanes) ----------------
ROW_ADJ = 0                    # rows 0:32    adjg | A_1 | A_2 | A_3   (cols 0:32,32:64,64:96,96:128)
ROW_A4X = N                    # rows 32:64   A_4 (cols 0:32) | x (cols 32:48)
ROW_WB1 = 2 * N                # rows 64:80   [dw1 | root1 | W1_1..W1_4]   (cols 0:96)
ROW_WB2 = ROW_WB1 + F_IN       # rows 80:96   [root2 | W2_1..W2_4]         (cols 0:80)
ROW_W3 = ROW_WB2 + HID         # rows 96:112  [dw2 | dwfc | wfc]           (cols 0:48)
ROW_OHS = ROW_W3 + HID         # rows 112:144 src one-hots^T  [N, EPAD]
ROW_OHD = ROW_OHS + N          # rows 144:176 dst one-hots^T  [N, EPAD]
ROWS_BF = ROW_OHD + N          # 176 rows (multiple of 16 -> bf16 sublane-tile aligned)


# =========================== fused Pallas kernel ===========================

def _fused_net_kernel(bf_ref, f32_ref, score_ref, zout_ref):
    bf16 = jnp.bfloat16
    f32 = jnp.float32

    def mm(a, b):                       # bf16 operands -> f32 accumulation on the MXU
        return jnp.dot(a, b, preferred_element_type=f32)

    # ---- static unpacking of the two operand slabs ----
    adjg = bf_ref[ROW_ADJ:ROW_ADJ + N, 0:N]                        # GCN-normalized adjacency
    a_rel = (bf_ref[ROW_ADJ:ROW_ADJ + N, N:2 * N],                 # per-relation mean adjacencies
             bf_ref[ROW_ADJ:ROW_ADJ + N, 2 * N:3 * N],
             bf_ref[ROW_ADJ:ROW_ADJ + N, 3 * N:4 * N],
             bf_ref[ROW_A4X:ROW_A4X + N, 0:N])
    x = bf_ref[ROW_A4X:ROW_A4X + N, N:N + F_IN]                    # node features [N, F_IN]
    wbig1 = bf_ref[ROW_WB1:ROW_WB1 + F_IN, 0:(2 + NUM_REL) * HID]  # [F_IN, 96]
    wbig2 = bf_ref[ROW_WB2:ROW_WB2 + HID, 0:(1 + NUM_REL) * HID]   # [HID, 80]
    dw2 = bf_ref[ROW_W3:ROW_W3 + HID, 0:HID]
    dwfc = bf_ref[ROW_W3:ROW_W3 + HID, HID:2 * HID]
    wfc = bf_ref[ROW_W3:ROW_W3 + HID, 2 * HID:3 * HID]
    oht_src = bf_ref[ROW_OHS:ROW_OHS + N, :]                       # [N, EPAD]
    oht_dst = bf_ref[ROW_OHD:ROW_OHD + N, :]                       # [N, EPAD]

    noise = f32_ref[0:N, 0:HID]                                    # torch.randn(y.size())
    db1 = f32_ref[0:1, HID:2 * HID]
    db2 = f32_ref[1:2, HID:2 * HID]
    dbfc = f32_ref[2:3, HID:2 * HID]
    rb1 = f32_ref[3:4, HID:2 * HID]
    rb2 = f32_ref[4:5, HID:2 * HID]
    bfc = f32_ref[5:6, HID:2 * HID]

    # ---- stage 1: ONE wide x-matmul feeds Dropconv1, conv1 root and all relations ----
    u1 = mm(x, wbig1)                                              # [N, 96] f32
    hd = jnp.maximum(mm(adjg, u1[:, 0:HID].astype(bf16)) + db1, 0.0)   # relu(Dropconv1(x))
    c1 = u1[:, HID:2 * HID] + rb1                                  # conv1: root + bias
    for r in range(NUM_REL):                                       # + sum_r A_r @ (x W1_r)
        c1 = c1 + mm(a_rel[r], u1[:, (2 + r) * HID:(3 + r) * HID].astype(bf16))
    h1 = jnp.maximum(c1, 0.0).astype(bf16)                         # relu(conv1(x))

    # ---- Drop / variance path: Dropconv2 -> Dropfc1 -> reparameterize ----
    g2 = mm(adjg, mm(hd.astype(bf16), dw2).astype(bf16)) + db2     # Dropconv2
    z = jnp.exp(-0.5 * (mm(g2.astype(bf16), dwfc) + dbfc))         # std = exp(-0.5*logvar)

    # ---- RGCN layer 2 + fc1 + noise gate ----
    u2 = mm(h1, wbig2)                                             # [N, 80] f32
    c2 = u2[:, 0:HID] + rb2                                        # conv2: root + bias
    for r in range(NUM_REL):
        c2 = c2 + mm(a_rel[r], u2[:, (1 + r) * HID:(2 + r) * HID].astype(bf16))
    y = mm(c2.astype(bf16), wfc) + bfc                             # fc1
    out = y * (noise * z + 1.0)                                    # y.mul(randn * z + 1)

    # ---- lane-dense [N, 128] output slab: z in lanes 0:16, out in lanes 16:32 ----
    pad = jnp.zeros((N, EPAD - 2 * HID), f32)
    zout_ref[...] = jnp.concatenate([z, out, pad], axis=1)

    # ---- edge scoring: einsum('ef,ef->e', out[idx1], out[idx0]) via bf16 one-hot gathers ----
    out_bf = out.astype(bf16)
    xj = lax.dot_general(out_bf, oht_src, (((0,), (0,)), ((), ())),
                         preferred_element_type=f32)               # [HID, EPAD] = out[idx0]^T
    xi = lax.dot_general(out_bf, oht_dst, (((0,), (0,)), ((), ())),
                         preferred_element_type=f32)               # [HID, EPAD] = out[idx1]^T
    score_ref[...] = jnp.sum(xi * xj, axis=0, keepdims=True)       # [1, EPAD] lane-dense


def _vmem():
    return pl.BlockSpec(memory_space=pltpu.MemorySpace.VMEM)


def net_forward(bf_slab, f32_slab):
    """Returns (score_padded [1, EPAD], zout [N, EPAD] with z|out in lanes 0:32)."""
    return pl.pallas_call(
        _fused_net_kernel,
        out_shape=(jax.ShapeDtypeStruct((1, EPAD), jnp.float32),
                   jax.ShapeDtypeStruct((N, EPAD), jnp.float32)),
        in_specs=[_vmem(), _vmem()],
        out_specs=(_vmem(), _vmem()),
        cost_estimate=pl.CostEstimate(flops=850_000, transcendentals=512,
                                      bytes_accessed=80_000),
    )(bf_slab, f32_slab)


# ======================= glue: graph structure (XLA, outside kernel) ========================

def gcn_norm_adj(edge_index, n):
    """GCNConv normalization: D^-1/2 (A + remaining self-loops) D^-1/2, indexed [dst, src]."""
    src, dst = edge_index[0], edge_index[1]
    adj = jnp.zeros((n, n), jnp.float32).at[dst, src].add(1.0)
    diag = jnp.diagonal(adj)
    adj = adj + jnp.diag(jnp.where(diag > 0.0, 0.0, 1.0))     # add_remaining_self_loops
    deg = adj.sum(axis=1)
    dinv = jnp.where(deg > 0, deg ** -0.5, 0.0)
    return dinv[:, None] * adj * dinv[None, :]


def rgcn_mean_adj(edge_index, edge_type, n, num_rel):
    """Per-relation mean-aggregation adjacency [R, dst, src] (RGCNConv aggr='mean')."""
    src, dst = edge_index[0], edge_index[1]
    adjs = []
    for r in range(num_rel):
        mask = (edge_type == r).astype(jnp.float32)
        a = jnp.zeros((n, n), jnp.float32).at[dst, src].add(mask)
        deg = a.sum(axis=1, keepdims=True)
        adjs.append(a / jnp.where(deg > 0, deg, 1.0))
    return jnp.stack(adjs)


# ============================== main ==================================

if __name__ == "__main__":
    key = jax.random.PRNGKey(0)
    ks = jax.random.split(key, 20)
    bf16 = jnp.bfloat16
    f32 = jnp.float32

    # --- data (synthetic, deterministic) ---
    x_f32 = jax.random.normal(ks[0], (N, F_IN), f32)
    train_edge_index = jax.random.randint(ks[1], (2, E_TRAIN), 0, N)
    edge_type = jax.random.randint(ks[2], (E_TRAIN,), 0, NUM_REL)
    pos_edge_index = jax.random.randint(ks[3], (2, E_POS), 0, N)
    neg_edge_index = jax.random.randint(ks[4], (2, E_NEG), 0, N)

    # --- RGCN parameters (basis decomposition combined host-side) ---
    basis1 = 0.1 * jax.random.normal(ks[5], (NUM_BASES, F_IN, HID), f32)
    comp1 = 0.1 * jax.random.normal(ks[6], (NUM_REL, NUM_BASES), f32)
    root1 = 0.1 * jax.random.normal(ks[7], (F_IN, HID), f32)
    rb1 = jnp.zeros((1, HID), f32)
    basis2 = 0.1 * jax.random.normal(ks[8], (NUM_BASES, HID, HID), f32)
    comp2 = 0.1 * jax.random.normal(ks[9], (NUM_REL, NUM_BASES), f32)
    root2 = 0.1 * jax.random.normal(ks[10], (HID, HID), f32)
    rb2 = jnp.zeros((1, HID), f32)
    w1_rel = jnp.einsum('rb,bio->rio', comp1, basis1)   # [R, F_IN, HID]
    w2_rel = jnp.einsum('rb,bio->rio', comp2, basis2)   # [R, HID, HID]
    wfc = 0.1 * jax.random.normal(ks[11], (HID, HID), f32)
    bfc = 0.01 * jax.random.normal(ks[12], (1, HID), f32)

    # --- Drop (variance) path parameters ---
    dw1 = 0.1 * jax.random.normal(ks[13], (F_IN, HID), f32)
    db1 = jnp.zeros((1, HID), f32)
    dw2 = 0.1 * jax.random.normal(ks[14], (HID, HID), f32)
    db2 = jnp.zeros((1, HID), f32)
    dwfc = 0.1 * jax.random.normal(ks[15], (HID, HID), f32)
    dbfc = 0.01 * jax.random.normal(ks[16], (1, HID), f32)

    noise = jax.random.normal(ks[17], (N, HID), f32)    # torch.randn(y.size()) equivalent

    # --- graph structure / gathers (glue) ---
    adj_gcn = gcn_norm_adj(train_edge_index, N)
    adj_rel = rgcn_mean_adj(train_edge_index, edge_type, N, NUM_REL)

    total_edge_index = jnp.concatenate([pos_edge_index, neg_edge_index], axis=-1)
    oh_src_t = jax.nn.one_hot(total_edge_index[0], N, dtype=f32).T   # [N, E_TOT]
    oh_dst_t = jax.nn.one_hot(total_edge_index[1], N, dtype=f32).T   # [N, E_TOT]

    # --- single bf16 operand slab (adjacencies, x, all weights, one-hot gathers) ---
    wbig1 = jnp.concatenate([dw1, root1] + [w1_rel[r] for r in range(NUM_REL)], axis=1)  # [16, 96]
    wbig2 = jnp.concatenate([root2] + [w2_rel[r] for r in range(NUM_REL)], axis=1)       # [16, 80]
    slab = jnp.zeros((ROWS_BF, LANES), f32)
    slab = slab.at[ROW_ADJ:ROW_ADJ + N, 0:N].set(adj_gcn)
    slab = slab.at[ROW_ADJ:ROW_ADJ + N, N:2 * N].set(adj_rel[0])
    slab = slab.at[ROW_ADJ:ROW_ADJ + N, 2 * N:3 * N].set(adj_rel[1])
    slab = slab.at[ROW_ADJ:ROW_ADJ + N, 3 * N:4 * N].set(adj_rel[2])
    slab = slab.at[ROW_A4X:ROW_A4X + N, 0:N].set(adj_rel[3])
    slab = slab.at[ROW_A4X:ROW_A4X + N, N:N + F_IN].set(x_f32)
    slab = slab.at[ROW_WB1:ROW_WB1 + F_IN, 0:(2 + NUM_REL) * HID].set(wbig1)
    slab = slab.at[ROW_WB2:ROW_WB2 + HID, 0:(1 + NUM_REL) * HID].set(wbig2)
    slab = slab.at[ROW_W3:ROW_W3 + HID, 0:HID].set(dw2)
    slab = slab.at[ROW_W3:ROW_W3 + HID, HID:2 * HID].set(dwfc)
    slab = slab.at[ROW_W3:ROW_W3 + HID, 2 * HID:3 * HID].set(wfc)
    slab = slab.at[ROW_OHS:ROW_OHS + N, 0:E_TOT].set(oh_src_t)
    slab = slab.at[ROW_OHD:ROW_OHD + N, 0:E_TOT].set(oh_dst_t)
    bf_slab = slab.astype(bf16)                                      # [176, 128] bf16

    # --- single f32 operand slab (noise gate + the six bias rows) ---
    fslab = jnp.zeros((N, LANES), f32)
    fslab = fslab.at[0:N, 0:HID].set(noise)
    b_rows = jnp.concatenate([db1, db2, dbfc, rb1, rb2, bfc], axis=0)  # [6, HID]
    fslab = fslab.at[0:6, HID:2 * HID].set(b_rows)                     # [32, 128] f32

    # --- forward (TRAIN branch): one fused kernel ---
    score_pad, zout = net_forward(bf_slab, fslab)
    score_pad, zout = jax.block_until_ready((score_pad, zout))
    score = score_pad[0, :E_TOT]
    z = zout[:, 0:HID]
    out = zout[:, HID:2 * HID]

    # --- pure-JAX reference (mirrors the kernel's bf16 operand cast points) ---
    def mmf(a, b):
        return jnp.dot(a, b, preferred_element_type=f32)

    adjg_bf = adj_gcn.astype(bf16)
    adj_rel_bf = adj_rel.astype(bf16)
    x_bf = x_f32.astype(bf16)
    dw1_bf, dw2_bf, dwfc_bf = dw1.astype(bf16), dw2.astype(bf16), dwfc.astype(bf16)
    root1_bf, root2_bf, wfc_bf = root1.astype(bf16), root2.astype(bf16), wfc.astype(bf16)
    w1_rel_bf, w2_rel_bf = w1_rel.astype(bf16), w2_rel.astype(bf16)

    h = jnp.maximum(mmf(adjg_bf, mmf(x_bf, dw1_bf).astype(bf16)) + db1, 0.0)
    h = mmf(adjg_bf, mmf(h.astype(bf16), dw2_bf).astype(bf16)) + db2
    z_ref = jnp.exp(-0.5 * (mmf(h.astype(bf16), dwfc_bf) + dbfc))

    def rgcn_layer_ref(feat_bf, w_rel_bf, root_bf, bias):
        acc = mmf(feat_bf, root_bf) + bias
        for r in range(NUM_REL):
            msg = mmf(feat_bf, w_rel_bf[r]).astype(bf16)
            acc = acc + mmf(adj_rel_bf[r], msg)
        return acc

    y_ref = jnp.maximum(rgcn_layer_ref(x_bf, w1_rel_bf, root1_bf, rb1), 0.0).astype(bf16)
    y_ref = rgcn_layer_ref(y_ref, w2_rel_bf, root2_bf, rb2)
    out_ref = (mmf(y_ref.astype(bf16), wfc_bf) + bfc) * (noise * z_ref + 1.0)
    out_sc = out_ref.astype(bf16).astype(f32)     # scoring mirrors the kernel's bf16 gather
    score_ref = jnp.sum(out_sc[total_edge_index[1]] * out_sc[total_edge_index[0]], axis=-1)

    np.testing.assert_allclose(np.asarray(z), np.asarray(z_ref), rtol=5e-3, atol=5e-3)
    np.testing.assert_allclose(np.asarray(out), np.asarray(out_ref), rtol=5e-3, atol=5e-3)
    np.testing.assert_allclose(np.asarray(score), np.asarray(score_ref), rtol=5e-3, atol=5e-3)

    print("KERNEL_OK")
</pallas_src>

<mosaic_0001>
module attributes {stable_mosaic.version = 11 : i64} {
  func.func @_fused_net_kernel(%arg0: memref<176x128xbf16, #tpu.memory_space<vmem>>, %arg1: memref<32x128xf32, #tpu.memory_space<vmem>>, %arg2: memref<1x128xf32, #tpu.memory_space<vmem>>, %arg3: memref<32x128xf32, #tpu.memory_space<vmem>>) attributes {dimension_semantics = [], scalar_prefetch = 0 : i64, scratch_operands = 0 : i64, tpu.core_type = #tpu.core_type<tc>} {
    %c0 = arith.constant 0 : index
    %c0_0 = arith.constant 0 : index
    %0 = vector.load %arg0[%c0, %c0_0] : memref<176x128xbf16, #tpu.memory_space<vmem>>, vector<32x32xbf16>
    %c0_1 = arith.constant 0 : index
    %c32 = arith.constant 32 : index
    %1 = vector.load %arg0[%c0_1, %c32] : memref<176x128xbf16, #tpu.memory_space<vmem>>, vector<32x32xbf16>
    %c0_2 = arith.constant 0 : index
    %c64 = arith.constant 64 : index
    %2 = vector.load %arg0[%c0_2, %c64] : memref<176x128xbf16, #tpu.memory_space<vmem>>, vector<32x32xbf16>
    %c0_3 = arith.constant 0 : index
    %c96 = arith.constant 96 : index
    %3 = vector.load %arg0[%c0_3, %c96] : memref<176x128xbf16, #tpu.memory_space<vmem>>, vector<32x32xbf16>
    %c32_4 = arith.constant 32 : index
    %c0_5 = arith.constant 0 : index
    %4 = vector.load %arg0[%c32_4, %c0_5] : memref<176x128xbf16, #tpu.memory_space<vmem>>, vector<32x32xbf16>
    %c32_6 = arith.constant 32 : index
    %c32_7 = arith.constant 32 : index
    %5 = vector.load %arg0[%c32_6, %c32_7] : memref<176x128xbf16, #tpu.memory_space<vmem>>, vector<32x16xbf16>
    %c64_8 = arith.constant 64 : index
    %c0_9 = arith.constant 0 : index
    %6 = vector.load %arg0[%c64_8, %c0_9] : memref<176x128xbf16, #tpu.memory_space<vmem>>, vector<16x96xbf16>
    %c80 = arith.constant 80 : index
    %c0_10 = arith.constant 0 : index
    %7 = vector.load %arg0[%c80, %c0_10] : memref<176x128xbf16, #tpu.memory_space<vmem>>, vector<16x80xbf16>
    %c96_11 = arith.constant 96 : index
    %c0_12 = arith.constant 0 : index
    %8 = vector.load %arg0[%c96_11, %c0_12] : memref<176x128xbf16, #tpu.memory_space<vmem>>, vector<16x16xbf16>
    %c96_13 = arith.constant 96 : index
    %c16 = arith.constant 16 : index
    %9 = vector.load %arg0[%c96_13, %c16] : memref<176x128xbf16, #tpu.memory_space<vmem>>, vector<16x16xbf16>
    %c96_14 = arith.constant 96 : index
    %c32_15 = arith.constant 32 : index
    %10 = vector.load %arg0[%c96_14, %c32_15] : memref<176x128xbf16, #tpu.memory_space<vmem>>, vector<16x16xbf16>
    %c112 = arith.constant 112 : index
    %c0_16 = arith.constant 0 : index
    %11 = vector.load %arg0[%c112, %c0_16] : memref<176x128xbf16, #tpu.memory_space<vmem>>, vector<32x128xbf16>
    %c144 = arith.constant 144 : index
    %c0_17 = arith.constant 0 : index
    %12 = vector.load %arg0[%c144, %c0_17] : memref<176x128xbf16, #tpu.memory_space<vmem>>, vector<32x128xbf16>
    %c0_18 = arith.constant 0 : index
    %c0_19 = arith.constant 0 : index
    %13 = vector.load %arg1[%c0_18, %c0_19] : memref<32x128xf32, #tpu.memory_space<vmem>>, vector<32x16xf32>
    %c0_20 = arith.constant 0 : index
    %c16_21 = arith.constant 16 : index
    %14 = vector.load %arg1[%c0_20, %c16_21] : memref<32x128xf32, #tpu.memory_space<vmem>>, vector<1x16xf32>
    %c1 = arith.constant 1 : index
    %c16_22 = arith.constant 16 : index
    %15 = vector.load %arg1[%c1, %c16_22] : memref<32x128xf32, #tpu.memory_space<vmem>>, vector<1x16xf32>
    %c2 = arith.constant 2 : index
    %c16_23 = arith.constant 16 : index
    %16 = vector.load %arg1[%c2, %c16_23] : memref<32x128xf32, #tpu.memory_space<vmem>>, vector<1x16xf32>
    %c3 = arith.constant 3 : index
    %c16_24 = arith.constant 16 : index
    %17 = vector.load %arg1[%c3, %c16_24] : memref<32x128xf32, #tpu.memory_space<vmem>>, vector<1x16xf32>
    %c4 = arith.constant 4 : index
    %c16_25 = arith.constant 16 : index
    %18 = vector.load %arg1[%c4, %c16_25] : memref<32x128xf32, #tpu.memory_space<vmem>>, vector<1x16xf32>
    %c5 = arith.constant 5 : index
    %c16_26 = arith.constant 16 : index
    %19 = vector.load %arg1[%c5, %c16_26] : memref<32x128xf32, #tpu.memory_space<vmem>>, vector<1x16xf32>
    %cst = arith.constant dense<0.000000e+00> : vector<32x96xf32>
    %20 = tpu.matmul %5, %6, %cst {dimension_numbers = #tpu.dot_dimension_numbers<[1], [0], [0], [1], [0, 0, 1, 1], [], []>} : vector<32x16xbf16>, vector<16x96xbf16>, vector<32x96xf32> -> vector<32x96xf32>
    %21 = vector.extract_strided_slice %20 {offsets = [0, 0], sizes = [32, 16], strides = [1, 1]} : vector<32x96xf32> to vector<32x16xf32>
    %22 = arith.truncf %21 : vector<32x16xf32> to vector<32x16xbf16>
    %cst_27 = arith.constant dense<0.000000e+00> : vector<32x16xf32>
    %23 = tpu.matmul %0, %22, %cst_27 {dimension_numbers = #tpu.dot_dimension_numbers<[1], [0], [0], [1], [0, 0, 1, 1], [], []>} : vector<32x32xbf16>, vector<32x16xbf16>, vector<32x16xf32> -> vector<32x16xf32>
    %24 = vector.broadcast %14 : vector<1x16xf32> to vector<32x16xf32>
    %25 = arith.addf %23, %24 : vector<32x16xf32>
    %cst_28 = arith.constant 0.000000e+00 : f32
    %26 = vector.broadcast %cst_28 : f32 to vector<32x16xf32>
    %27 = arith.maximumf %25, %26 : vector<32x16xf32>
    %28 = vector.extract_strided_slice %20 {offsets = [0, 16], sizes = [32, 16], strides = [1, 1]} : vector<32x96xf32> to vector<32x16xf32>
    %29 = vector.broadcast %17 : vector<1x16xf32> to vector<32x16xf32>
    %30 = arith.addf %28, %29 : vector<32x16xf32>
    %31 = vector.extract_strided_slice %20 {offsets = [0, 32], sizes = [32, 16], strides = [1, 1]} : vector<32x96xf32> to vector<32x16xf32>
    %32 = arith.truncf %31 : vector<32x16xf32> to vector<32x16xbf16>
    %cst_29 = arith.constant dense<0.000000e+00> : vector<32x16xf32>
    %33 = tpu.matmul %1, %32, %cst_29 {dimension_numbers = #tpu.dot_dimension_numbers<[1], [0], [0], [1], [0, 0, 1, 1], [], []>} : vector<32x32xbf16>, vector<32x16xbf16>, vector<32x16xf32> -> vector<32x16xf32>
    %34 = arith.addf %30, %33 : vector<32x16xf32>
    %35 = vector.extract_strided_slice %20 {offsets = [0, 48], sizes = [32, 16], strides = [1, 1]} : vector<32x96xf32> to vector<32x16xf32>
    %36 = arith.truncf %35 : vector<32x16xf32> to vector<32x16xbf16>
    %cst_30 = arith.constant dense<0.000000e+00> : vector<32x16xf32>
    %37 = tpu.matmul %2, %36, %cst_30 {dimension_numbers = #tpu.dot_dimension_numbers<[1], [0], [0], [1], [0, 0, 1, 1], [], []>} : vector<32x32xbf16>, vector<32x16xbf16>, vector<32x16xf32> -> vector<32x16xf32>
    %38 = arith.addf %34, %37 : vector<32x16xf32>
    %39 = vector.extract_strided_slice %20 {offsets = [0, 64], sizes = [32, 16], strides = [1, 1]} : vector<32x96xf32> to vector<32x16xf32>
    %40 = arith.truncf %39 : vector<32x16xf32> to vector<32x16xbf16>
    %cst_31 = arith.constant dense<0.000000e+00> : vector<32x16xf32>
    %41 = tpu.matmul %3, %40, %cst_31 {dimension_numbers = #tpu.dot_dimension_numbers<[1], [0], [0], [1], [0, 0, 1, 1], [], []>} : vector<32x32xbf16>, vector<32x16xbf16>, vector<32x16xf32> -> vector<32x16xf32>
    %42 = arith.addf %38, %41 : vector<32x16xf32>
    %43 = vector.extract_strided_slice %20 {offsets = [0, 80], sizes = [32, 16], strides = [1, 1]} : vector<32x96xf32> to vector<32x16xf32>
    %44 = arith.truncf %43 : vector<32x16xf32> to vector<32x16xbf16>
    %cst_32 = arith.constant dense<0.000000e+00> : vector<32x16xf32>
    %45 = tpu.matmul %4, %44, %cst_32 {dimension_numbers = #tpu.dot_dimension_numbers<[1], [0], [0], [1], [0, 0, 1, 1], [], []>} : vector<32x32xbf16>, vector<32x16xbf16>, vector<32x16xf32> -> vector<32x16xf32>
    %46 = arith.addf %42, %45 : vector<32x16xf32>
    %cst_33 = arith.constant 0.000000e+00 : f32
    %47 = vector.broadcast %cst_33 : f32 to vector<32x16xf32>
    %48 = arith.maximumf %46, %47 : vector<32x16xf32>
    %49 = arith.truncf %48 : vector<32x16xf32> to vector<32x16xbf16>
    %50 = arith.truncf %27 : vector<32x16xf32> to vector<32x16xbf16>
    %cst_34 = arith.constant dense<0.000000e+00> : vector<32x16xf32>
    %51 = tpu.matmul %50, %8, %cst_34 {dimension_numbers = #tpu.dot_dimension_numbers<[1], [0], [0], [1], [0, 0, 1, 1], [], []>} : vector<32x16xbf16>, vector<16x16xbf16>, vector<32x16xf32> -> vector<32x16xf32>
    %52 = arith.truncf %51 : vector<32x16xf32> to vector<32x16xbf16>
    %cst_35 = arith.constant dense<0.000000e+00> : vector<32x16xf32>
    %53 = tpu.matmul %0, %52, %cst_35 {dimension_numbers = #tpu.dot_dimension_numbers<[1], [0], [0], [1], [0, 0, 1, 1], [], []>} : vector<32x32xbf16>, vector<32x16xbf16>, vector<32x16xf32> -> vector<32x16xf32>
    %54 = vector.broadcast %15 : vector<1x16xf32> to vector<32x16xf32>
    %55 = arith.addf %53, %54 : vector<32x16xf32>
    %56 = arith.truncf %55 : vector<32x16xf32> to vector<32x16xbf16>
    %cst_36 = arith.constant dense<0.000000e+00> : vector<32x16xf32>
    %57 = tpu.matmul %56, %9, %cst_36 {dimension_numbers = #tpu.dot_dimension_numbers<[1], [0], [0], [1], [0, 0, 1, 1], [], []>} : vector<32x16xbf16>, vector<16x16xbf16>, vector<32x16xf32> -> vector<32x16xf32>
    %58 = vector.broadcast %16 : vector<1x16xf32> to vector<32x16xf32>
    %59 = arith.addf %57, %58 : vector<32x16xf32>
    %cst_37 = arith.constant -5.000000e-01 : f32
    %60 = vector.broadcast %cst_37 : f32 to vector<32x16xf32>
    %61 = arith.mulf %60, %59 : vector<32x16xf32>
    %62 = math.exp %61 : vector<32x16xf32>
    %cst_38 = arith.constant dense<0.000000e+00> : vector<32x80xf32>
    %63 = tpu.matmul %49, %7, %cst_38 {dimension_numbers = #tpu.dot_dimension_numbers<[1], [0], [0], [1], [0, 0, 1, 1], [], []>} : vector<32x16xbf16>, vector<16x80xbf16>, vector<32x80xf32> -> vector<32x80xf32>
    %64 = vector.extract_strided_slice %63 {offsets = [0, 0], sizes = [32, 16], strides = [1, 1]} : vector<32x80xf32> to vector<32x16xf32>
    %65 = vector.broadcast %18 : vector<1x16xf32> to vector<32x16xf32>
    %66 = arith.addf %64, %65 : vector<32x16xf32>
    %67 = vector.extract_strided_slice %63 {offsets = [0, 16], sizes = [32, 16], strides = [1, 1]} : vector<32x80xf32> to vector<32x16xf32>
    %68 = arith.truncf %67 : vector<32x16xf32> to vector<32x16xbf16>
    %cst_39 = arith.constant dense<0.000000e+00> : vector<32x16xf32>
    %69 = tpu.matmul %1, %68, %cst_39 {dimension_numbers = #tpu.dot_dimension_numbers<[1], [0], [0], [1], [0, 0, 1, 1], [], []>} : vector<32x32xbf16>, vector<32x16xbf16>, vector<32x16xf32> -> vector<32x16xf32>
    %70 = arith.addf %66, %69 : vector<32x16xf32>
    %71 = vector.extract_strided_slice %63 {offsets = [0, 32], sizes = [32, 16], strides = [1, 1]} : vector<32x80xf32> to vector<32x16xf32>
    %72 = arith.truncf %71 : vector<32x16xf32> to vector<32x16xbf16>
    %cst_40 = arith.constant dense<0.000000e+00> : vector<32x16xf32>
    %73 = tpu.matmul %2, %72, %cst_40 {dimension_numbers = #tpu.dot_dimension_numbers<[1], [0], [0], [1], [0, 0, 1, 1], [], []>} : vector<32x32xbf16>, vector<32x16xbf16>, vector<32x16xf32> -> vector<32x16xf32>
    %74 = arith.addf %70, %73 : vector<32x16xf32>
    %75 = vector.extract_strided_slice %63 {offsets = [0, 48], sizes = [32, 16], strides = [1, 1]} : vector<32x80xf32> to vector<32x16xf32>
    %76 = arith.truncf %75 : vector<32x16xf32> to vector<32x16xbf16>
    %cst_41 = arith.constant dense<0.000000e+00> : vector<32x16xf32>
    %77 = tpu.matmul %3, %76, %cst_41 {dimension_numbers = #tpu.dot_dimension_numbers<[1], [0], [0], [1], [0, 0, 1, 1], [], []>} : vector<32x32xbf16>, vector<32x16xbf16>, vector<32x16xf32> -> vector<32x16xf32>
    %78 = arith.addf %74, %77 : vector<32x16xf32>
    %79 = vector.extract_strided_slice %63 {offsets = [0, 64], sizes = [32, 16], strides = [1, 1]} : vector<32x80xf32> to vector<32x16xf32>
    %80 = arith.truncf %79 : vector<32x16xf32> to vector<32x16xbf16>
    %cst_42 = arith.constant dense<0.000000e+00> : vector<32x16xf32>
    %81 = tpu.matmul %4, %80, %cst_42 {dimension_numbers = #tpu.dot_dimension_numbers<[1], [0], [0], [1], [0, 0, 1, 1], [], []>} : vector<32x32xbf16>, vector<32x16xbf16>, vector<32x16xf32> -> vector<32x16xf32>
    %82 = arith.addf %78, %81 : vector<32x16xf32>
    %83 = arith.truncf %82 : vector<32x16xf32> to vector<32x16xbf16>
    %cst_43 = arith.constant dense<0.000000e+00> : vector<32x16xf32>
    %84 = tpu.matmul %83, %10, %cst_43 {dimension_numbers = #tpu.dot_dimension_numbers<[1], [0], [0], [1], [0, 0, 1, 1], [], []>} : vector<32x16xbf16>, vector<16x16xbf16>, vector<32x16xf32> -> vector<32x16xf32>
    %85 = vector.broadcast %19 : vector<1x16xf32> to vector<32x16xf32>
    %86 = arith.addf %84, %85 : vector<32x16xf32>
    %87 = arith.mulf %13, %62 : vector<32x16xf32>
    %cst_44 = arith.constant 1.000000e+00 : f32
    %88 = vector.broadcast %cst_44 : f32 to vector<32x16xf32>
    %89 = arith.addf %87, %88 : vector<32x16xf32>
    %90 = arith.mulf %86, %89 : vector<32x16xf32>
    %cst_45 = arith.constant 0.000000e+00 : f32
    %91 = vector.broadcast %cst_45 : f32 to vector<32x96xf32>
    %92 = tpu.concatenate %62, %90, %91 in 1 : vector<32x16xf32>, vector<32x16xf32>, vector<32x96xf32> -> vector<32x128xf32>
    %c0_46 = arith.constant 0 : index
    %c0_47 = arith.constant 0 : index
    %93 = vector.load %arg3[%c0_46, %c0_47] : memref<32x128xf32, #tpu.memory_space<vmem>>, vector<32x128xf32>
    tpu.vector_store %arg3[%c0_46, %c0_47], %92 {strides = array<i32>} : memref<32x128xf32, #tpu.memory_space<vmem>>, vector<32x128xf32>,
    %94 = arith.truncf %90 : vector<32x16xf32> to vector<32x16xbf16>
    %cst_48 = arith.constant dense<0.000000e+00> : vector<16x128xf32>
    %95 = tpu.matmul %94, %11, %cst_48 {dimension_numbers = #tpu.dot_dimension_numbers<[0], [0], [1], [1], [0, 1, 1, 1], [], []>} : vector<32x16xbf16>, vector<32x128xbf16>, vector<16x128xf32> -> vector<16x128xf32>
    %cst_49 = arith.constant dense<0.000000e+00> : vector<16x128xf32>
    %96 = tpu.matmul %94, %12, %cst_49 {dimension_numbers = #tpu.dot_dimension_numbers<[0], [0], [1], [1], [0, 1, 1, 1], [], []>} : vector<32x16xbf16>, vector<32x128xbf16>, vector<16x128xf32> -> vector<16x128xf32>
    %97 = arith.mulf %96, %95 : vector<16x128xf32>
    %cst_50 = arith.constant dense<0.000000e+00> : vector<128xf32>
    %98 = vector.multi_reduction <add>, %97, %cst_50 [0] : vector<16x128xf32> to vector<128xf32>
    %99 = vector.shape_cast %98 : vector<128xf32> to vector<1x128xf32>
    %c0_51 = arith.constant 0 : index
    %c0_52 = arith.constant 0 : index
    %100 = vector.load %arg2[%c0_51, %c0_52] : memref<1x128xf32, #tpu.memory_space<vmem>>, vector<1x128xf32>
    tpu.vector_store %arg2[%c0_51, %c0_52], %99 {strides = array<i32>} : memref<1x128xf32, #tpu.memory_space<vmem>>, vector<1x128xf32>,
    return
  }
}

</mosaic_0001>

<llo_original>
// kernel: tpu_custom_call.1
$region0: #{tpu_custom_call.1}
  #allocation0 [shape = 'u32[]', space=smem, size = 0x4, offset = 0x4, fixed_abs, tag = 'smem constant byte address 0x4 - core index']
  #allocation1 [shape = 'u32[144,128]{1,0:T(1,128)}', space=vmem, size = 0x12000, scoped, tag = 'internal scratch']
  %s0 = inlined_call_operand.hbm [shape: bf16[176,128], index: 0, kind: input, shape index: {}]
  %s1 = inlined_call_operand.hbm [shape: f32[32,128], index: 1, kind: input, shape index: {}]
  %s2 = inlined_call_operand.hbm [shape: f32[1,128], index: 2, kind: output, shape index: {0}]
  %s3 = inlined_call_operand.hbm [shape: f32[32,128], index: 3, kind: output, shape index: {1}]
  %4 = xla_tuple %s2, %s3
  %s5 = sld [smem:[#allocation0]]
  $region34: #{tpu_custom_call.1} parent=0
    _
  %s7 = ssub.s32 1, %s5
  %s8 = scalar_select 0, %s7, %s5
  $region1: #{tpu_custom_call.1} parent=0
    #allocation2 [shape = 'u8[45056]{0}', space=vmem, size = 0xb000, scoped, tag = 'input window, operand 0, single buffered']
    #allocation3 [shape = 's32[1]{0}', space=sflag, size = 0x4, scoped, tag = 'scoped memory for tpu_custom_call.1']
    #allocation4 [shape = 's32[1]{0}', space=sflag, size = 0x4, scoped, tag = 'scoped memory for tpu_custom_call.1']
    #allocation5 [shape = 'u8[16384]{0}', space=vmem, size = 0x4000, scoped, tag = 'input window, operand 1, single buffered']
    #allocation6 [shape = 's32[1]{0}', space=sflag, size = 0x4, scoped, tag = 'scoped memory for tpu_custom_call.1']
    #allocation7 [shape = 'u8[512]{0}', space=vmem, size = 0x400, scoped, tag = 'output window, operand 0, single buffered']
    #allocation8 [shape = 'u8[16384]{0}', space=vmem, size = 0x4000, scoped, tag = 'output window, operand 1, single buffered']
    #allocation9 [shape = 's32[1]{0}', space=sflag, size = 0x4, scoped, tag = 'scoped memory for tpu_custom_call.1']
    %9 = vsyncpa [#allocation3], 0
    %10 = vsyncpa [#allocation6], 0
    %11 = vsyncpa [#allocation4], 0
    %12 = vsyncpa [#allocation9], 0
    // Predicated region
    $region2: #{tpu_custom_call.1} parent=1 // pred_check
      _
    $region3: #{tpu_custom_call.1} parent=1 // pred_check_branch
      %14 = sbr.rel (0) target = $region5
    $region4: #{tpu_custom_call.1} parent=1 // pred_region
      %s16 = ssub.s32 1408, 1408
      %17 = vsyncadd [#allocation3], %s16
      %s18 = sshll.u32 [#allocation2], 4
      %s19 = int_to_ptr.vmem [resolvable:$true] %s18
      %24 = dma.hbm_to_vmem [thread:$0]  %s0, 1408, %s19, [#allocation3], 64, 64, 4
    $region5: #{tpu_custom_call.1} parent=1 // pred_fallthru
      _
    // Predicated region
    $region6: #{tpu_custom_call.1} parent=1 // pred_check
      _
    $region7: #{tpu_custom_call.1} parent=1 // pred_check_branch
      %26 = sbr.rel (0) target = $region9
    $region8: #{tpu_custom_call.1} parent=1 // pred_region
      %s28 = ssub.s32 512, 512
      %29 = vsyncadd [#allocation6], %s28
      %s30 = sshll.u32 [#allocation5], 4
      %s31 = int_to_ptr.vmem [resolvable:$true] %s30
      %36 = dma.hbm_to_vmem [thread:$0]  %s1, 512, %s31, [#allocation6], 128, 128, 8
    $region9: #{tpu_custom_call.1} parent=1 // pred_fallthru
      _
    // Predicated region
    $region10: #{tpu_custom_call.1} parent=1 // pred_check
      _
    $region11: #{tpu_custom_call.1} parent=1 // pred_check_branch
      %38 = sbr.rel (0) target = $region13
    $region12: #{tpu_custom_call.1} parent=1 // pred_region
      %39 = dma.done [#allocation3], 1408
    $region13: #{tpu_custom_call.1} parent=1 // pred_fallthru
      _
    // Predicated region
    $region14: #{tpu_custom_call.1} parent=1 // pred_check
      _
    $region15: #{tpu_custom_call.1} parent=1 // pred_check_branch
      %41 = sbr.rel (0) target = $region17
    $region16: #{tpu_custom_call.1} parent=1 // pred_region
      %42 = dma.done [#allocation6], 512
    $region17: #{tpu_custom_call.1} parent=1 // pred_fallthru
      _
    %v44 = vld [vmem:[#allocation2] sm:$0xf]
    %v45 = vld [vmem:[#allocation2 + $0x4] sm:$0xf]
    %v46 = vld [vmem:[#allocation2 + $0x8] sm:$0xf]
    %v47 = vld [vmem:[#allocation2 + $0xc] sm:$0xf]
    %v48 = vld [vmem:[#allocation2 + $0x10] sm:$0xf]
    %v49 = vld [vmem:[#allocation2 + $0x14] sm:$0xf]
    %v50 = vld [vmem:[#allocation2 + $0x18] sm:$0xf]
    %v51 = vld [vmem:[#allocation2 + $0x1c] sm:$0xf]
    %v52 = vld [vmem:[#allocation2 + $0x20] sm:$0xf]
    %v53 = vld [vmem:[#allocation2 + $0x24] sm:$0xf]
    %v54 = vld [vmem:[#allocation2 + $0x28] sm:$0xf]
    %v55 = vld [vmem:[#allocation2 + $0x2c] sm:$0xf]
    %v56 = vld [vmem:[#allocation2 + $0x30] sm:$0xf]
    %v57 = vld [vmem:[#allocation2 + $0x34] sm:$0xf]
    %v58 = vld [vmem:[#allocation2 + $0x38] sm:$0xf]
    %v59 = vld [vmem:[#allocation2 + $0x3c] sm:$0xf]
    %v60 = vld [vmem:[#allocation2 + $0x40] sm:$0xf]
    %v61 = vld [vmem:[#allocation2 + $0x44] sm:$0xf]
    %v62 = vld [vmem:[#allocation2 + $0x48] sm:$0xf]
    %v63 = vld [vmem:[#allocation2 + $0x4c] sm:$0xf]
    %v64 = vld [vmem:[#allocation2 + $0x50] sm:$0xf]
    %v65 = vld [vmem:[#allocation2 + $0x54] sm:$0xf]
    %v66 = vld [vmem:[#allocation5] sm:$0xff]
    %v67 = vld [vmem:[#allocation5 + $0x8] sm:$0xff]
    %v68 = vld [vmem:[#allocation5 + $0x10] sm:$0xff]
    %v69 = vld [vmem:[#allocation5 + $0x18] sm:$0xff]
    %v70 = vld [vmem:[#allocation5] sm:$0x1]
    %v71 = vld [vmem:[#allocation5 + $0x1] sm:$0x1]
    %v72 = vld [vmem:[#allocation5 + $0x2] sm:$0x1]
    %v73 = vld [vmem:[#allocation5 + $0x3] sm:$0x1]
    %v74 = vld [vmem:[#allocation5 + $0x4] sm:$0x1]
    %v75 = vld [vmem:[#allocation5 + $0x5] sm:$0x1]
    %v80 = vunpack.c.l.b16 %v48
    %v81 = vunpack.c.l.b16 %v49
    %v82 = vunpack.c.l.b16 %v50
    %v83 = vunpack.c.l.b16 %v51
    %v84 = vpack.c.b16 %v81, %v80
    %v85 = vpack.c.b16 %v83, %v82
    %86 = vrot.lane.b32.xlu0 %v84, 96
    %v87 = vpop.permute.xlu0 %86
    %88 = vrot.lane.b32.xlu0 %v85, 96
    %v89 = vpop.permute.xlu0 %88
    %v92 = vunpack.c.l.b16 %v52
    %v93 = vunpack.c.l.b16 %v53
    %v94 = vpack.c.b16 %v93, %v92
    %vm96 = vcmask 130048
    %v98 = vsel %vm96, %v87, 0
    %v101 = vsel %vm96, %v89, 0
    %103 = vmatprep.subr.bf16.mxu0 0
    %104 = vmatpush1.bf16.msra.mxu0 %v94
    %105 = vmatprep.subr.bf16.mxu0 0
    %106 = vmatpush1.bf16.msra.mxu0 0
    %107 = vmatprep.subr.bf16.mxu0 0
    %108 = vmatpush1.bf16.msra.mxu0 0
    %109 = vmatprep.subr.bf16.mxu0 0
    %110 = vmatpush1.bf16.msra.mxu0 0
    %111 = vmatprep.subr.bf16.mxu0 0
    %112 = vmatpush1.bf16.msra.mxu0 0
    %113 = vmatprep.subr.bf16.mxu0 0
    %114 = vmatpush1.bf16.msra.mxu0 0
    %115 = vmatprep.subr.bf16.mxu0 0
    %116 = vmatpush1.bf16.msra.mxu0 0
    %117 = vmatprep.subr.bf16.mxu0 0
    %118 = vmatpush1.bf16.msra.mxu0 0
    %119 = vmatprep.subr.bf16.mxu0 0
    %120 = vmatpush1.bf16.msra.mxu0 0
    %121 = vmatprep.subr.bf16.mxu0 0
    %122 = vmatpush1.bf16.msra.mxu0 0
    %123 = vmatprep.subr.bf16.mxu0 0
    %124 = vmatpush1.bf16.msra.mxu0 0
    %125 = vmatprep.subr.bf16.mxu0 0
    %126 = vmatpush1.bf16.msra.mxu0 0
    %127 = vmatprep.subr.bf16.mxu0 0
    %128 = vmatpush1.bf16.msra.mxu0 0
    %129 = vmatprep.subr.bf16.mxu0 0
    %130 = vmatpush1.bf16.msra.mxu0 0
    %131 = vmatprep.subr.bf16.mxu0 0
    %132 = vmatpush1.bf16.msra.mxu0 0
    %133 = vmatprep.subr.bf16.mxu0 0
    %134 = vmatpush1.bf16.msra.mxu0 0
    %135 = vmatprep.mubr.bf16.mxu0 0
    %136 = vmatmul.mubr.bf16.gmra.mrb[0].mxu0 %v98
    %v137 = vpop.f32.mrb[0].mxu0
    %v138 = vadd.f32 0.0, %v137
    %v139 = vpop.f32.mrb[0].mxu0
    %v140 = vpop.f32.mrb[0].mxu0
    %v141 = vadd.f32 0.0, %v140
    %v142 = vpop.f32.mrb[0].mxu0
    %143 = vmatprep.mubr.bf16.mxu0 0
    %144 = vmatmul.mubr.bf16.gmra.mrb[0].mxu0 %v101
    %v145 = vpop.f32.mrb[0].mxu0
    %v146 = vadd.f32 0.0, %v145
    %v147 = vpop.f32.mrb[0].mxu0
    %v148 = vpop.f32.mrb[0].mxu0
    %v149 = vadd.f32 0.0, %v148
    %v150 = vpop.f32.mrb[0].mxu0
    %151 = vdwg.mxu0
    %v152 = vpack.c.bf16 %v141, %v138
    %v153 = vpack.c.bf16 %v149, %v146
    %v154 = vlaneseq
    %v155 = vshrl.u32 %v154, 7
    %v156 = vsub.s32 0, %v155
    %v157 = vrot.slane %v70, %v156
    %v162 = vunpack.c.l.b16 %v44
    %v163 = vunpack.c.l.b16 %v45
    %v164 = vunpack.c.l.b16 %v46
    %v165 = vunpack.c.l.b16 %v47
    %v166 = vpack.c.b16 %v163, %v162
    %v167 = vpack.c.b16 %v165, %v164
    %169 = vrot.lane.b32.xlu0 %v157, 112
    %v170 = vpop.permute.xlu0 %169
    %vm172 = vcmask 261120
    %v174 = vsel %vm172, %v166, 0
    %v177 = vsel %vm172, %v167, 0
    %179 = vmatprep.subr.bf16.mxu0 0
    %180 = vmatpush1.bf16.msra.mxu0 %v152
    %181 = vmatprep.subr.bf16.mxu0 0
    %182 = vmatpush1.bf16.msra.mxu0 %v153
    %183 = vmatprep.subr.bf16.mxu0 0
    %184 = vmatpush1.bf16.msra.mxu0 0
    %185 = vmatprep.subr.bf16.mxu0 0
    %186 = vmatpush1.bf16.msra.mxu0 0
    %187 = vmatprep.subr.bf16.mxu0 0
    %188 = vmatpush1.bf16.msra.mxu0 0
    %189 = vmatprep.subr.bf16.mxu0 0
    %190 = vmatpush1.bf16.msra.mxu0 0
    %191 = vmatprep.subr.bf16.mxu0 0
    %192 = vmatpush1.bf16.msra.mxu0 0
    %193 = vmatprep.subr.bf16.mxu0 0
    %194 = vmatpush1.bf16.msra.mxu0 0
    %195 = vmatprep.subr.bf16.mxu0 0
    %196 = vmatpush1.bf16.msra.mxu0 0
    %197 = vmatprep.subr.bf16.mxu0 0
    %198 = vmatpush1.bf16.msra.mxu0 0
    %199 = vmatprep.subr.bf16.mxu0 0
    %200 = vmatpush1.bf16.msra.mxu0 0
    %201 = vmatprep.subr.bf16.mxu0 0
    %202 = vmatpush1.bf16.msra.mxu0 0
    %203 = vmatprep.subr.bf16.mxu0 0
    %204 = vmatpush1.bf16.msra.mxu0 0
    %205 = vmatprep.subr.bf16.mxu0 0
    %206 = vmatpush1.bf16.msra.mxu0 0
    %207 = vmatprep.subr.bf16.mxu0 0
    %208 = vmatpush1.bf16.msra.mxu0 0
    %209 = vmatprep.subr.bf16.mxu0 0
    %210 = vmatpush1.bf16.msra.mxu0 0
    %211 = vmatprep.mubr.bf16.mxu0 0
    %212 = vmatmul.mubr.bf16.gmra.mrb[0].mxu0 %v174
    %v213 = vpop.f32.mrb[0].mxu0
    %v214 = vadd.f32 %v170, %v213
    %v215 = vpop.f32.mrb[0].mxu0
    %v216 = vpop.f32.mrb[0].mxu0
    %v217 = vadd.f32 %v170, %v216
    %v218 = vpop.f32.mrb[0].mxu0
    %219 = vmatprep.mubr.bf16.mxu0 0
    %220 = vmatmul.mubr.bf16.gmra.mrb[0].mxu0 %v177
    %v221 = vpop.f32.mrb[0].mxu0
    %v222 = vadd.f32 %v170, %v221
    %v223 = vpop.f32.mrb[0].mxu0
    %v224 = vpop.f32.mrb[0].mxu0
    %v225 = vadd.f32 %v170, %v224
    %v226 = vpop.f32.mrb[0].mxu0
    %227 = vdwg.mxu0
    %v228 = vmax.f32 %v214, 0.0
    %v229 = vmax.f32 %v217, 0.0
    %v230 = vmax.f32 %v222, 0.0
    %v231 = vmax.f32 %v225, 0.0
    %v232 = vlaneseq
    %v233 = vshrl.u32 %v232, 7
    %v234 = vsub.s32 0, %v233
    %v235 = vrot.slane %v73, %v234
    %v236 = vadd.f32 %v138, %v235
    %v237 = vadd.f32 %v141, %v235
    %v238 = vadd.f32 %v146, %v235
    %v239 = vadd.f32 %v149, %v235
    %240 = vrot.lane.b32.xlu0 %v166, 96
    %v241 = vpop.permute.xlu0 %240
    %242 = vrot.lane.b32.xlu0 %v167, 96
    %v243 = vpop.permute.xlu0 %242
    %246 = vrot.lane.b32.xlu0 %v152, 96
    %v247 = vpop.permute.xlu0 %246
    %248 = vrot.lane.b32.xlu0 %v153, 96
    %v249 = vpop.permute.xlu0 %248
    %v253 = vsel %vm172, %v241, 0
    %v256 = vsel %vm172, %v243, 0
    %258 = vmatprep.subr.bf16.mxu0 0
    %259 = vmatpush1.bf16.msra.mxu0 %v247
    %260 = vmatprep.subr.bf16.mxu0 0
    %261 = vmatpush1.bf16.msra.mxu0 %v249
    %262 = vmatprep.subr.bf16.mxu0 0
    %263 = vmatpush1.bf16.msra.mxu0 0
    %264 = vmatprep.subr.bf16.mxu0 0
    %265 = vmatpush1.bf16.msra.mxu0 0
    %266 = vmatprep.subr.bf16.mxu0 0
    %267 = vmatpush1.bf16.msra.mxu0 0
    %268 = vmatprep.subr.bf16.mxu0 0
    %269 = vmatpush1.bf16.msra.mxu0 0
    %270 = vmatprep.subr.bf16.mxu0 0
    %271 = vmatpush1.bf16.msra.mxu0 0
    %272 = vmatprep.subr.bf16.mxu0 0
    %273 = vmatpush1.bf16.msra.mxu0 0
    %274 = vmatprep.subr.bf16.mxu0 0
    %275 = vmatpush1.bf16.msra.mxu0 0
    %276 = vmatprep.subr.bf16.mxu0 0
    %277 = vmatpush1.bf16.msra.mxu0 0
    %278 = vmatprep.subr.bf16.mxu0 0
    %279 = vmatpush1.bf16.msra.mxu0 0
    %280 = vmatprep.subr.bf16.mxu0 0
    %281 = vmatpush1.bf16.msra.mxu0 0
    %282 = vmatprep.subr.bf16.mxu0 0
    %283 = vmatpush1.bf16.msra.mxu0 0
    %284 = vmatprep.subr.bf16.mxu0 0
    %285 = vmatpush1.bf16.msra.mxu0 0
    %286 = vmatprep.subr.bf16.mxu0 0
    %287 = vmatpush1.bf16.msra.mxu0 0
    %288 = vmatprep.subr.bf16.mxu0 0
    %289 = vmatpush1.bf16.msra.mxu0 0
    %290 = vmatprep.mubr.bf16.mxu0 0
    %291 = vmatmul.mubr.bf16.gmra.mrb[0].mxu0 %v253
    %v292 = vpop.f32.mrb[0].mxu0
    %v293 = vadd.f32 0.0, %v292
    %v294 = vpop.f32.mrb[0].mxu0
    %v295 = vpop.f32.mrb[0].mxu0
    %v296 = vadd.f32 0.0, %v295
    %v297 = vpop.f32.mrb[0].mxu0
    %298 = vmatprep.mubr.bf16.mxu0 0
    %299 = vmatmul.mubr.bf16.gmra.mrb[0].mxu0 %v256
    %v300 = vpop.f32.mrb[0].mxu0
    %v301 = vadd.f32 0.0, %v300
    %v302 = vpop.f32.mrb[0].mxu0
    %v303 = vpop.f32.mrb[0].mxu0
    %v304 = vadd.f32 0.0, %v303
    %v305 = vpop.f32.mrb[0].mxu0
    %306 = vdwg.mxu0
    %311 = vrot.lane.b32.xlu0 %v293, 16
    %v312 = vpop.permute.xlu0 %311
    %313 = vrot.lane.b32.xlu0 %v296, 16
    %v314 = vpop.permute.xlu0 %313
    %315 = vrot.lane.b32.xlu0 %v301, 16
    %v316 = vpop.permute.xlu0 %315
    %317 = vrot.lane.b32.xlu0 %v304, 16
    %v318 = vpop.permute.xlu0 %317
    %v323 = vadd.f32 %v236, %v312
    %v324 = vadd.f32 %v237, %v314
    %v325 = vadd.f32 %v238, %v316
    %v326 = vadd.f32 %v239, %v318
    %327 = vrot.lane.b32.xlu0 %v166, 64
    %v328 = vpop.permute.xlu0 %327
    %329 = vrot.lane.b32.xlu0 %v167, 64
    %v330 = vpop.permute.xlu0 %329
    %331 = vrot.lane.b32.xlu0 %v152, 80
    %v332 = vpop.permute.xlu0 %331
    %333 = vrot.lane.b32.xlu0 %v153, 80
    %v334 = vpop.permute.xlu0 %333
    %v338 = vsel %vm172, %v328, 0
    %v341 = vsel %vm172, %v330, 0
    %343 = vmatprep.subr.bf16.mxu0 0
    %344 = vmatpush1.bf16.msra.mxu0 %v332
    %345 = vmatprep.subr.bf16.mxu0 0
    %346 = vmatpush1.bf16.msra.mxu0 %v334
    %347 = vmatprep.subr.bf16.mxu0 0
    %348 = vmatpush1.bf16.msra.mxu0 0
    %349 = vmatprep.subr.bf16.mxu0 0
    %350 = vmatpush1.bf16.msra.mxu0 0
    %351 = vmatprep.subr.bf16.mxu0 0
    %352 = vmatpush1.bf16.msra.mxu0 0
    %353 = vmatprep.subr.bf16.mxu0 0
    %354 = vmatpush1.bf16.msra.mxu0 0
    %355 = vmatprep.subr.bf16.mxu0 0
    %356 = vmatpush1.bf16.msra.mxu0 0
    %357 = vmatprep.subr.bf16.mxu0 0
    %358 = vmatpush1.bf16.msra.mxu0 0
    %359 = vmatprep.subr.bf16.mxu0 0
    %360 = vmatpush1.bf16.msra.mxu0 0
    %361 = vmatprep.subr.bf16.mxu0 0
    %362 = vmatpush1.bf16.msra.mxu0 0
    %363 = vmatprep.subr.bf16.mxu0 0
    %364 = vmatpush1.bf16.msra.mxu0 0
    %365 = vmatprep.subr.bf16.mxu0 0
    %366 = vmatpush1.bf16.msra.mxu0 0
    %367 = vmatprep.subr.bf16.mxu0 0
    %368 = vmatpush1.bf16.msra.mxu0 0
    %369 = vmatprep.subr.bf16.mxu0 0
    %370 = vmatpush1.bf16.msra.mxu0 0
    %371 = vmatprep.subr.bf16.mxu0 0
    %372 = vmatpush1.bf16.msra.mxu0 0
    %373 = vmatprep.subr.bf16.mxu0 0
    %374 = vmatpush1.bf16.msra.mxu0 0
    %375 = vmatprep.mubr.bf16.mxu0 0
    %376 = vmatmul.mubr.bf16.gmra.mrb[0].mxu0 %v338
    %v377 = vpop.f32.mrb[0].mxu0
    %v378 = vadd.f32 0.0, %v377
    %v379 = vpop.f32.mrb[0].mxu0
    %v380 = vpop.f32.mrb[0].mxu0
    %v381 = vadd.f32 0.0, %v380
    %v382 = vpop.f32.mrb[0].mxu0
    %383 = vmatprep.mubr.bf16.mxu0 0
    %384 = vmatmul.mubr.bf16.gmra.mrb[0].mxu0 %v341
    %v385 = vpop.f32.mrb[0].mxu0
    %v386 = vadd.f32 0.0, %v385
    %v387 = vpop.f32.mrb[0].mxu0
    %v388 = vpop.f32.mrb[0].mxu0
    %v389 = vadd.f32 0.0, %v388
    %v390 = vpop.f32.mrb[0].mxu0
    %391 = vdwg.mxu0
    %396 = vrot.lane.b32.xlu0 %v378, 16
    %v397 = vpop.permute.xlu0 %396
    %398 = vrot.lane.b32.xlu0 %v381, 16
    %v399 = vpop.permute.xlu0 %398
    %400 = vrot.lane.b32.xlu0 %v386, 16
    %v401 = vpop.permute.xlu0 %400
    %402 = vrot.lane.b32.xlu0 %v389, 16
    %v403 = vpop.permute.xlu0 %402
    %v408 = vadd.f32 %v323, %v397
    %v409 = vadd.f32 %v324, %v399
    %v410 = vadd.f32 %v325, %v401
    %v411 = vadd.f32 %v326, %v403
    %412 = vrot.lane.b32.xlu0 %v166, 32
    %v413 = vpop.permute.xlu0 %412
    %414 = vrot.lane.b32.xlu0 %v167, 32
    %v415 = vpop.permute.xlu0 %414
    %416 = vrot.lane.b32.xlu0 %v152, 64
    %v417 = vpop.permute.xlu0 %416
    %418 = vrot.lane.b32.xlu0 %v153, 64
    %v419 = vpop.permute.xlu0 %418
    %v423 = vsel %vm172, %v413, 0
    %v426 = vsel %vm172, %v415, 0
    %428 = vmatprep.subr.bf16.mxu0 0
    %429 = vmatpush1.bf16.msra.mxu0 %v417
    %430 = vmatprep.subr.bf16.mxu0 0
    %431 = vmatpush1.bf16.msra.mxu0 %v419
    %432 = vmatprep.subr.bf16.mxu0 0
    %433 = vmatpush1.bf16.msra.mxu0 0
    %434 = vmatprep.subr.bf16.mxu0 0
    %435 = vmatpush1.bf16.msra.mxu0 0
    %436 = vmatprep.subr.bf16.mxu0 0
    %437 = vmatpush1.bf16.msra.mxu0 0
    %438 = vmatprep.subr.bf16.mxu0 0
    %439 = vmatpush1.bf16.msra.mxu0 0
    %440 = vmatprep.subr.bf16.mxu0 0
    %441 = vmatpush1.bf16.msra.mxu0 0
    %442 = vmatprep.subr.bf16.mxu0 0
    %443 = vmatpush1.bf16.msra.mxu0 0
    %444 = vmatprep.subr.bf16.mxu0 0
    %445 = vmatpush1.bf16.msra.mxu0 0
    %446 = vmatprep.subr.bf16.mxu0 0
    %447 = vmatpush1.bf16.msra.mxu0 0
    %448 = vmatprep.subr.bf16.mxu0 0
    %449 = vmatpush1.bf16.msra.mxu0 0
    %450 = vmatprep.subr.bf16.mxu0 0
    %451 = vmatpush1.bf16.msra.mxu0 0
    %452 = vmatprep.subr.bf16.mxu0 0
    %453 = vmatpush1.bf16.msra.mxu0 0
    %454 = vmatprep.subr.bf16.mxu0 0
    %455 = vmatpush1.bf16.msra.mxu0 0
    %456 = vmatprep.subr.bf16.mxu0 0
    %457 = vmatpush1.bf16.msra.mxu0 0
    %458 = vmatprep.subr.bf16.mxu0 0
    %459 = vmatpush1.bf16.msra.mxu0 0
    %460 = vmatprep.mubr.bf16.mxu0 0
    %461 = vmatmul.mubr.bf16.gmra.mrb[0].mxu0 %v423
    %v462 = vpop.f32.mrb[0].mxu0
    %v463 = vadd.f32 0.0, %v462
    %v464 = vpop.f32.mrb[0].mxu0
    %v465 = vpop.f32.mrb[0].mxu0
    %v466 = vadd.f32 0.0, %v465
    %v467 = vpop.f32.mrb[0].mxu0
    %468 = vmatprep.mubr.bf16.mxu0 0
    %469 = vmatmul.mubr.bf16.gmra.mrb[0].mxu0 %v426
    %v470 = vpop.f32.mrb[0].mxu0
    %v471 = vadd.f32 0.0, %v470
    %v472 = vpop.f32.mrb[0].mxu0
    %v473 = vpop.f32.mrb[0].mxu0
    %v474 = vadd.f32 0.0, %v473
    %v475 = vpop.f32.mrb[0].mxu0
    %476 = vdwg.mxu0
    %481 = vrot.lane.b32.xlu0 %v463, 16
    %v482 = vpop.permute.xlu0 %481
    %483 = vrot.lane.b32.xlu0 %v466, 16
    %v484 = vpop.permute.xlu0 %483
    %485 = vrot.lane.b32.xlu0 %v471, 16
    %v486 = vpop.permute.xlu0 %485
    %487 = vrot.lane.b32.xlu0 %v474, 16
    %v488 = vpop.permute.xlu0 %487
    %v493 = vadd.f32 %v408, %v482
    %v494 = vadd.f32 %v409, %v484
    %v495 = vadd.f32 %v410, %v486
    %v496 = vadd.f32 %v411, %v488
    %497 = vrot.lane.b32.xlu0 %v152, 48
    %v498 = vpop.permute.xlu0 %497
    %499 = vrot.lane.b32.xlu0 %v153, 48
    %v500 = vpop.permute.xlu0 %499
    %v504 = vsel %vm172, %v84, 0
    %v507 = vsel %vm172, %v85, 0
    %509 = vmatprep.subr.bf16.mxu0 0
    %510 = vmatpush1.bf16.msra.mxu0 %v498
    %511 = vmatprep.subr.bf16.mxu0 0
    %512 = vmatpush1.bf16.msra.mxu0 %v500
    %513 = vmatprep.subr.bf16.mxu0 0
    %514 = vmatpush1.bf16.msra.mxu0 0
    %515 = vmatprep.subr.bf16.mxu0 0
    %516 = vmatpush1.bf16.msra.mxu0 0
    %517 = vmatprep.subr.bf16.mxu0 0
    %518 = vmatpush1.bf16.msra.mxu0 0
    %519 = vmatprep.subr.bf16.mxu0 0
    %520 = vmatpush1.bf16.msra.mxu0 0
    %521 = vmatprep.subr.bf16.mxu0 0
    %522 = vmatpush1.bf16.msra.mxu0 0
    %523 = vmatprep.subr.bf16.mxu0 0
    %524 = vmatpush1.bf16.msra.mxu0 0
    %525 = vmatprep.subr.bf16.mxu0 0
    %526 = vmatpush1.bf16.msra.mxu0 0
    %527 = vmatprep.subr.bf16.mxu0 0
    %528 = vmatpush1.bf16.msra.mxu0 0
    %529 = vmatprep.subr.bf16.mxu0 0
    %530 = vmatpush1.bf16.msra.mxu0 0
    %531 = vmatprep.subr.bf16.mxu0 0
    %532 = vmatpush1.bf16.msra.mxu0 0
    %533 = vmatprep.subr.bf16.mxu0 0
    %534 = vmatpush1.bf16.msra.mxu0 0
    %535 = vmatprep.subr.bf16.mxu0 0
    %536 = vmatpush1.bf16.msra.mxu0 0
    %537 = vmatprep.subr.bf16.mxu0 0
    %538 = vmatpush1.bf16.msra.mxu0 0
    %539 = vmatprep.subr.bf16.mxu0 0
    %540 = vmatpush1.bf16.msra.mxu0 0
    %541 = vmatprep.mubr.bf16.mxu0 0
    %542 = vmatmul.mubr.bf16.gmra.mrb[0].mxu0 %v504
    %v543 = vpop.f32.mrb[0].mxu0
    %v544 = vadd.f32 0.0, %v543
    %v545 = vpop.f32.mrb[0].mxu0
    %v546 = vpop.f32.mrb[0].mxu0
    %v547 = vadd.f32 0.0, %v546
    %v548 = vpop.f32.mrb[0].mxu0
    %549 = vmatprep.mubr.bf16.mxu0 0
    %550 = vmatmul.mubr.bf16.gmra.mrb[0].mxu0 %v507
    %v551 = vpop.f32.mrb[0].mxu0
    %v552 = vadd.f32 0.0, %v551
    %v553 = vpop.f32.mrb[0].mxu0
    %v554 = vpop.f32.mrb[0].mxu0
    %v555 = vadd.f32 0.0, %v554
    %v556 = vpop.f32.mrb[0].mxu0
    %557 = vdwg.mxu0
    %562 = vrot.lane.b32.xlu0 %v544, 16
    %v563 = vpop.permute.xlu0 %562
    %564 = vrot.lane.b32.xlu0 %v547, 16
    %v565 = vpop.permute.xlu0 %564
    %566 = vrot.lane.b32.xlu0 %v552, 16
    %v567 = vpop.permute.xlu0 %566
    %568 = vrot.lane.b32.xlu0 %v555, 16
    %v569 = vpop.permute.xlu0 %568
    %v574 = vadd.f32 %v493, %v563
    %v575 = vadd.f32 %v494, %v565
    %v576 = vadd.f32 %v495, %v567
    %v577 = vadd.f32 %v496, %v569
    %v578 = vmax.f32 %v574, 0.0
    %v579 = vmax.f32 %v575, 0.0
    %v580 = vmax.f32 %v576, 0.0
    %v581 = vmax.f32 %v577, 0.0
    %v582 = vpack.c.bf16 %v579, %v578
    %v583 = vpack.c.bf16 %v581, %v580
    %v584 = vpack.c.bf16 %v229, %v228
    %v585 = vpack.c.bf16 %v231, %v230
    %v588 = vunpack.c.l.b16 %v56
    %v589 = vunpack.c.l.b16 %v57
    %v590 = vpack.c.b16 %v589, %v588
    %v593 = vsel %vm96, %v584, 0
    %v596 = vsel %vm96, %v585, 0
    %598 = vmatprep.subr.bf16.mxu0 0
    %599 = vmatpush1.bf16.msra.mxu0 %v590
    %600 = vmatprep.subr.bf16.mxu0 0
    %601 = vmatpush1.bf16.msra.mxu0 0
    %602 = vmatprep.subr.bf16.mxu0 0
    %603 = vmatpush1.bf16.msra.mxu0 0
    %604 = vmatprep.subr.bf16.mxu0 0
    %605 = vmatpush1.bf16.msra.mxu0 0
    %606 = vmatprep.subr.bf16.mxu0 0
    %607 = vmatpush1.bf16.msra.mxu0 0
    %608 = vmatprep.subr.bf16.mxu0 0
    %609 = vmatpush1.bf16.msra.mxu0 0
    %610 = vmatprep.subr.bf16.mxu0 0
    %611 = vmatpush1.bf16.msra.mxu0 0
    %612 = vmatprep.subr.bf16.mxu0 0
    %613 = vmatpush1.bf16.msra.mxu0 0
    %614 = vmatprep.subr.bf16.mxu0 0
    %615 = vmatpush1.bf16.msra.mxu0 0
    %616 = vmatprep.subr.bf16.mxu0 0
    %617 = vmatpush1.bf16.msra.mxu0 0
    %618 = vmatprep.subr.bf16.mxu0 0
    %619 = vmatpush1.bf16.msra.mxu0 0
    %620 = vmatprep.subr.bf16.mxu0 0
    %621 = vmatpush1.bf16.msra.mxu0 0
    %622 = vmatprep.subr.bf16.mxu0 0
    %623 = vmatpush1.bf16.msra.mxu0 0
    %624 = vmatprep.subr.bf16.mxu0 0
    %625 = vmatpush1.bf16.msra.mxu0 0
    %626 = vmatprep.subr.bf16.mxu0 0
    %627 = vmatpush1.bf16.msra.mxu0 0
    %628 = vmatprep.subr.bf16.mxu0 0
    %629 = vmatpush1.bf16.msra.mxu0 0
    %630 = vmatprep.mubr.bf16.mxu0 0
    %631 = vmatmul.mubr.bf16.gmra.mrb[0].mxu0 %v593
    %v632 = vpop.f32.mrb[0].mxu0
    %v633 = vadd.f32 0.0, %v632
    %v634 = vpop.f32.mrb[0].mxu0
    %v635 = vpop.f32.mrb[0].mxu0
    %v636 = vadd.f32 0.0, %v635
    %v637 = vpop.f32.mrb[0].mxu0
    %638 = vmatprep.mubr.bf16.mxu0 0
    %639 = vmatmul.mubr.bf16.gmra.mrb[0].mxu0 %v596
    %v640 = vpop.f32.mrb[0].mxu0
    %v641 = vadd.f32 0.0, %v640
    %v642 = vpop.f32.mrb[0].mxu0
    %v643 = vpop.f32.mrb[0].mxu0
    %v644 = vadd.f32 0.0, %v643
    %v645 = vpop.f32.mrb[0].mxu0
    %646 = vdwg.mxu0
    %v647 = vpack.c.bf16 %v636, %v633
    %v648 = vpack.c.bf16 %v644, %v641
    %v649 = vlaneseq
    %v650 = vshrl.u32 %v649, 7
    %v651 = vsub.s32 0, %v650
    %v652 = vrot.slane %v71, %v651
    %654 = vrot.lane.b32.xlu0 %v652, 112
    %v655 = vpop.permute.xlu0 %654
    %657 = vmatprep.subr.bf16.mxu0 0
    %658 = vmatpush1.bf16.msra.mxu0 %v647
    %659 = vmatprep.subr.bf16.mxu0 0
    %660 = vmatpush1.bf16.msra.mxu0 %v648
    %661 = vmatprep.subr.bf16.mxu0 0
    %662 = vmatpush1.bf16.msra.mxu0 0
    %663 = vmatprep.subr.bf16.mxu0 0
    %664 = vmatpush1.bf16.msra.mxu0 0
    %665 = vmatprep.subr.bf16.mxu0 0
    %666 = vmatpush1.bf16.msra.mxu0 0
    %667 = vmatprep.subr.bf16.mxu0 0
    %668 = vmatpush1.bf16.msra.mxu0 0
    %669 = vmatprep.subr.bf16.mxu0 0
    %670 = vmatpush1.bf16.msra.mxu0 0
    %671 = vmatprep.subr.bf16.mxu0 0
    %672 = vmatpush1.bf16.msra.mxu0 0
    %673 = vmatprep.subr.bf16.mxu0 0
    %674 = vmatpush1.bf16.msra.mxu0 0
    %675 = vmatprep.subr.bf16.mxu0 0
    %676 = vmatpush1.bf16.msra.mxu0 0
    %677 = vmatprep.subr.bf16.mxu0 0
    %678 = vmatpush1.bf16.msra.mxu0 0
    %679 = vmatprep.subr.bf16.mxu0 0
    %680 = vmatpush1.bf16.msra.mxu0 0
    %681 = vmatprep.subr.bf16.mxu0 0
    %682 = vmatpush1.bf16.msra.mxu0 0
    %683 = vmatprep.subr.bf16.mxu0 0
    %684 = vmatpush1.bf16.msra.mxu0 0
    %685 = vmatprep.subr.bf16.mxu0 0
    %686 = vmatpush1.bf16.msra.mxu0 0
    %687 = vmatprep.subr.bf16.mxu0 0
    %688 = vmatpush1.bf16.msra.mxu0 0
    %689 = vmatprep.mubr.bf16.mxu0 0
    %690 = vmatmul.mubr.bf16.gmra.mrb[0].mxu0 %v174
    %v691 = vpop.f32.mrb[0].mxu0
    %v692 = vadd.f32 %v655, %v691
    %v693 = vpop.f32.mrb[0].mxu0
    %v694 = vpop.f32.mrb[0].mxu0
    %v695 = vadd.f32 %v655, %v694
    %v696 = vpop.f32.mrb[0].mxu0
    %697 = vmatprep.mubr.bf16.mxu0 0
    %698 = vmatmul.mubr.bf16.gmra.mrb[0].mxu0 %v177
    %v699 = vpop.f32.mrb[0].mxu0
    %v700 = vadd.f32 %v655, %v699
    %v701 = vpop.f32.mrb[0].mxu0
    %v702 = vpop.f32.mrb[0].mxu0
    %v703 = vadd.f32 %v655, %v702
    %v704 = vpop.f32.mrb[0].mxu0
    %705 = vdwg.mxu0
    %v706 = vpack.c.bf16 %v695, %v692
    %v707 = vpack.c.bf16 %v703, %v700
    %v708 = vlaneseq
    %v709 = vshrl.u32 %v708, 7
    %v710 = vsub.s32 0, %v709
    %v711 = vrot.slane %v72, %v710
    %712 = vrot.lane.b32.xlu0 %v590, 112
    %v713 = vpop.permute.xlu0 %712
    %716 = vrot.lane.b32.xlu0 %v711, 112
    %v717 = vpop.permute.xlu0 %716
    %v720 = vsel %vm96, %v706, 0
    %v723 = vsel %vm96, %v707, 0
    %725 = vmatprep.subr.bf16.mxu0 0
    %726 = vmatpush1.bf16.msra.mxu0 %v713
    %727 = vmatprep.subr.bf16.mxu0 0
    %728 = vmatpush1.bf16.msra.mxu0 0
    %729 = vmatprep.subr.bf16.mxu0 0
    %730 = vmatpush1.bf16.msra.mxu0 0
    %731 = vmatprep.subr.bf16.mxu0 0
    %732 = vmatpush1.bf16.msra.mxu0 0
    %733 = vmatprep.subr.bf16.mxu0 0
    %734 = vmatpush1.bf16.msra.mxu0 0
    %735 = vmatprep.subr.bf16.mxu0 0
    %736 = vmatpush1.bf16.msra.mxu0 0
    %737 = vmatprep.subr.bf16.mxu0 0
    %738 = vmatpush1.bf16.msra.mxu0 0
    %739 = vmatprep.subr.bf16.mxu0 0
    %740 = vmatpush1.bf16.msra.mxu0 0
    %741 = vmatprep.subr.bf16.mxu0 0
    %742 = vmatpush1.bf16.msra.mxu0 0
    %743 = vmatprep.subr.bf16.mxu0 0
    %744 = vmatpush1.bf16.msra.mxu0 0
    %745 = vmatprep.subr.bf16.mxu0 0
    %746 = vmatpush1.bf16.msra.mxu0 0
    %747 = vmatprep.subr.bf16.mxu0 0
    %748 = vmatpush1.bf16.msra.mxu0 0
    %749 = vmatprep.subr.bf16.mxu0 0
    %750 = vmatpush1.bf16.msra.mxu0 0
    %751 = vmatprep.subr.bf16.mxu0 0
    %752 = vmatpush1.bf16.msra.mxu0 0
    %753 = vmatprep.subr.bf16.mxu0 0
    %754 = vmatpush1.bf16.msra.mxu0 0
    %755 = vmatprep.subr.bf16.mxu0 0
    %756 = vmatpush1.bf16.msra.mxu0 0
    %757 = vmatprep.mubr.bf16.mxu0 0
    %758 = vmatmul.mubr.bf16.gmra.mrb[0].mxu0 %v720
    %v759 = vpop.f32.mrb[0].mxu0
    %v760 = vadd.f32 %v717, %v759
    %v761 = vpop.f32.mrb[0].mxu0
    %v762 = vpop.f32.mrb[0].mxu0
    %v763 = vadd.f32 %v717, %v762
    %v764 = vpop.f32.mrb[0].mxu0
    %765 = vmatprep.mubr.bf16.mxu0 0
    %766 = vmatmul.mubr.bf16.gmra.mrb[0].mxu0 %v723
    %v767 = vpop.f32.mrb[0].mxu0
    %v768 = vadd.f32 %v717, %v767
    %v769 = vpop.f32.mrb[0].mxu0
    %v770 = vpop.f32.mrb[0].mxu0
    %v771 = vadd.f32 %v717, %v770
    %v772 = vpop.f32.mrb[0].mxu0
    %773 = vdwg.mxu0
    %v774 = vmul.f32 %v760, -0.5
    %v775 = vmul.f32 %v763, -0.5
    %v776 = vmul.f32 %v768, -0.5
    %v777 = vmul.f32 %v771, -0.5
    %v778 = vmul.f32 %v774, 1.442695
    %v779 = vpow.pop %v778
    %v780 = vmul.f32 %v775, 1.442695
    %v781 = vpow.pop %v780
    %v782 = vmul.f32 %v776, 1.442695
    %v783 = vpow.pop %v782
    %v784 = vmul.f32 %v777, 1.442695
    %v785 = vpow.pop %v784
    %788 = vrot.lane.b32.xlu0 %v582, 112
    %v789 = vpop.permute.xlu0 %788
    %790 = vrot.lane.b32.xlu0 %v583, 112
    %v791 = vpop.permute.xlu0 %790
    %v794 = vunpack.c.l.b16 %v54
    %v795 = vunpack.c.l.b16 %v55
    %v796 = vpack.c.b16 %v795, %v794
    %v799 = vsel %vm96, %v789, 0
    %v802 = vsel %vm96, %v791, 0
    %804 = vmatprep.subr.bf16.mxu0 0
    %805 = vmatpush1.bf16.msra.mxu0 %v796
    %806 = vmatprep.subr.bf16.mxu0 0
    %807 = vmatpush1.bf16.msra.mxu0 0
    %808 = vmatprep.subr.bf16.mxu0 0
    %809 = vmatpush1.bf16.msra.mxu0 0
    %810 = vmatprep.subr.bf16.mxu0 0
    %811 = vmatpush1.bf16.msra.mxu0 0
    %812 = vmatprep.subr.bf16.mxu0 0
    %813 = vmatpush1.bf16.msra.mxu0 0
    %814 = vmatprep.subr.bf16.mxu0 0
    %815 = vmatpush1.bf16.msra.mxu0 0
    %816 = vmatprep.subr.bf16.mxu0 0
    %817 = vmatpush1.bf16.msra.mxu0 0
    %818 = vmatprep.subr.bf16.mxu0 0
    %819 = vmatpush1.bf16.msra.mxu0 0
    %820 = vmatprep.subr.bf16.mxu0 0
    %821 = vmatpush1.bf16.msra.mxu0 0
    %822 = vmatprep.subr.bf16.mxu0 0
    %823 = vmatpush1.bf16.msra.mxu0 0
    %824 = vmatprep.subr.bf16.mxu0 0
    %825 = vmatpush1.bf16.msra.mxu0 0
    %826 = vmatprep.subr.bf16.mxu0 0
    %827 = vmatpush1.bf16.msra.mxu0 0
    %828 = vmatprep.subr.bf16.mxu0 0
    %829 = vmatpush1.bf16.msra.mxu0 0
    %830 = vmatprep.subr.bf16.mxu0 0
    %831 = vmatpush1.bf16.msra.mxu0 0
    %832 = vmatprep.subr.bf16.mxu0 0
    %833 = vmatpush1.bf16.msra.mxu0 0
    %834 = vmatprep.subr.bf16.mxu0 0
    %835 = vmatpush1.bf16.msra.mxu0 0
    %836 = vmatprep.mubr.bf16.mxu0 0
    %837 = vmatmul.mubr.bf16.gmra.mrb[0].mxu0 %v799
    %v838 = vpop.f32.mrb[0].mxu0
    %v839 = vadd.f32 0.0, %v838
    %v840 = vpop.f32.mrb[0].mxu0
    %v841 = vpop.f32.mrb[0].mxu0
    %v842 = vadd.f32 0.0, %v841
    %v843 = vpop.f32.mrb[0].mxu0
    %844 = vmatprep.mubr.bf16.mxu0 0
    %845 = vmatmul.mubr.bf16.gmra.mrb[0].mxu0 %v802
    %v846 = vpop.f32.mrb[0].mxu0
    %v847 = vadd.f32 0.0, %v846
    %v848 = vpop.f32.mrb[0].mxu0
    %v849 = vpop.f32.mrb[0].mxu0
    %v850 = vadd.f32 0.0, %v849
    %v851 = vpop.f32.mrb[0].mxu0
    %852 = vdwg.mxu0
    %v853 = vlaneseq
    %v854 = vshrl.u32 %v853, 7
    %v855 = vsub.s32 0, %v854
    %v856 = vrot.slane %v74, %v855
    %858 = vrot.lane.b32.xlu0 %v856, 112
    %v859 = vpop.permute.xlu0 %858
    %v861 = vadd.f32 %v839, %v859
    %v862 = vadd.f32 %v842, %v859
    %v863 = vadd.f32 %v847, %v859
    %v864 = vadd.f32 %v850, %v859
    %v865 = vpack.c.bf16 %v842, %v839
    %v866 = vpack.c.bf16 %v850, %v847
    %869 = vrot.lane.b32.xlu0 %v865, 112
    %v870 = vpop.permute.xlu0 %869
    %871 = vrot.lane.b32.xlu0 %v866, 112
    %v872 = vpop.permute.xlu0 %871
    %875 = vmatprep.subr.bf16.mxu0 0
    %876 = vmatpush1.bf16.msra.mxu0 %v870
    %877 = vmatprep.subr.bf16.mxu0 0
    %878 = vmatpush1.bf16.msra.mxu0 %v872
    %879 = vmatprep.subr.bf16.mxu0 0
    %880 = vmatpush1.bf16.msra.mxu0 0
    %881 = vmatprep.subr.bf16.mxu0 0
    %882 = vmatpush1.bf16.msra.mxu0 0
    %883 = vmatprep.subr.bf16.mxu0 0
    %884 = vmatpush1.bf16.msra.mxu0 0
    %885 = vmatprep.subr.bf16.mxu0 0
    %886 = vmatpush1.bf16.msra.mxu0 0
    %887 = vmatprep.subr.bf16.mxu0 0
    %888 = vmatpush1.bf16.msra.mxu0 0
    %889 = vmatprep.subr.bf16.mxu0 0
    %890 = vmatpush1.bf16.msra.mxu0 0
    %891 = vmatprep.subr.bf16.mxu0 0
    %892 = vmatpush1.bf16.msra.mxu0 0
    %893 = vmatprep.subr.bf16.mxu0 0
    %894 = vmatpush1.bf16.msra.mxu0 0
    %895 = vmatprep.subr.bf16.mxu0 0
    %896 = vmatpush1.bf16.msra.mxu0 0
    %897 = vmatprep.subr.bf16.mxu0 0
    %898 = vmatpush1.bf16.msra.mxu0 0
    %899 = vmatprep.subr.bf16.mxu0 0
    %900 = vmatpush1.bf16.msra.mxu0 0
    %901 = vmatprep.subr.bf16.mxu0 0
    %902 = vmatpush1.bf16.msra.mxu0 0
    %903 = vmatprep.subr.bf16.mxu0 0
    %904 = vmatpush1.bf16.msra.mxu0 0
    %905 = vmatprep.subr.bf16.mxu0 0
    %906 = vmatpush1.bf16.msra.mxu0 0
    %907 = vmatprep.mubr.bf16.mxu0 0
    %908 = vmatmul.mubr.bf16.gmra.mrb[0].mxu0 %v253
    %v909 = vpop.f32.mrb[0].mxu0
    %v910 = vadd.f32 0.0, %v909
    %v911 = vpop.f32.mrb[0].mxu0
    %v912 = vpop.f32.mrb[0].mxu0
    %v913 = vadd.f32 0.0, %v912
    %v914 = vpop.f32.mrb[0].mxu0
    %915 = vmatprep.mubr.bf16.mxu0 0
    %916 = vmatmul.mubr.bf16.gmra.mrb[0].mxu0 %v256
    %v917 = vpop.f32.mrb[0].mxu0
    %v918 = vadd.f32 0.0, %v917
    %v919 = vpop.f32.mrb[0].mxu0
    %v920 = vpop.f32.mrb[0].mxu0
    %v921 = vadd.f32 0.0, %v920
    %v922 = vpop.f32.mrb[0].mxu0
    %923 = vdwg.mxu0
    %v924 = vadd.f32 %v861, %v910
    %v925 = vadd.f32 %v862, %v913
    %v926 = vadd.f32 %v863, %v918
    %v927 = vadd.f32 %v864, %v921
    %928 = vrot.lane.b32.xlu0 %v865, 96
    %v929 = vpop.permute.xlu0 %928
    %930 = vrot.lane.b32.xlu0 %v866, 96
    %v931 = vpop.permute.xlu0 %930
    %934 = vmatprep.subr.bf16.mxu0 0
    %935 = vmatpush1.bf16.msra.mxu0 %v929
    %936 = vmatprep.subr.bf16.mxu0 0
    %937 = vmatpush1.bf16.msra.mxu0 %v931
    %938 = vmatprep.subr.bf16.mxu0 0
    %939 = vmatpush1.bf16.msra.mxu0 0
    %940 = vmatprep.subr.bf16.mxu0 0
    %941 = vmatpush1.bf16.msra.mxu0 0
    %942 = vmatprep.subr.bf16.mxu0 0
    %943 = vmatpush1.bf16.msra.mxu0 0
    %944 = vmatprep.subr.bf16.mxu0 0
    %945 = vmatpush1.bf16.msra.mxu0 0
    %946 = vmatprep.subr.bf16.mxu0 0
    %947 = vmatpush1.bf16.msra.mxu0 0
    %948 = vmatprep.subr.bf16.mxu0 0
    %949 = vmatpush1.bf16.msra.mxu0 0
    %950 = vmatprep.subr.bf16.mxu0 0
    %951 = vmatpush1.bf16.msra.mxu0 0
    %952 = vmatprep.subr.bf16.mxu0 0
    %953 = vmatpush1.bf16.msra.mxu0 0
    %954 = vmatprep.subr.bf16.mxu0 0
    %955 = vmatpush1.bf16.msra.mxu0 0
    %956 = vmatprep.subr.bf16.mxu0 0
    %957 = vmatpush1.bf16.msra.mxu0 0
    %958 = vmatprep.subr.bf16.mxu0 0
    %959 = vmatpush1.bf16.msra.mxu0 0
    %960 = vmatprep.subr.bf16.mxu0 0
    %961 = vmatpush1.bf16.msra.mxu0 0
    %962 = vmatprep.subr.bf16.mxu0 0
    %963 = vmatpush1.bf16.msra.mxu0 0
    %964 = vmatprep.subr.bf16.mxu0 0
    %965 = vmatpush1.bf16.msra.mxu0 0
    %966 = vmatprep.mubr.bf16.mxu0 0
    %967 = vmatmul.mubr.bf16.gmra.mrb[0].mxu0 %v338
    %v968 = vpop.f32.mrb[0].mxu0
    %v969 = vadd.f32 0.0, %v968
    %v970 = vpop.f32.mrb[0].mxu0
    %v971 = vpop.f32.mrb[0].mxu0
    %v972 = vadd.f32 0.0, %v971
    %v973 = vpop.f32.mrb[0].mxu0
    %974 = vmatprep.mubr.bf16.mxu0 0
    %975 = vmatmul.mubr.bf16.gmra.mrb[0].mxu0 %v341
    %v976 = vpop.f32.mrb[0].mxu0
    %v977 = vadd.f32 0.0, %v976
    %v978 = vpop.f32.mrb[0].mxu0
    %v979 = vpop.f32.mrb[0].mxu0
    %v980 = vadd.f32 0.0, %v979
    %v981 = vpop.f32.mrb[0].mxu0
    %982 = vdwg.mxu0
    %v983 = vadd.f32 %v924, %v969
    %v984 = vadd.f32 %v925, %v972
    %v985 = vadd.f32 %v926, %v977
    %v986 = vadd.f32 %v927, %v980
    %987 = vrot.lane.b32.xlu0 %v865, 80
    %v988 = vpop.permute.xlu0 %987
    %989 = vrot.lane.b32.xlu0 %v866, 80
    %v990 = vpop.permute.xlu0 %989
    %993 = vmatprep.subr.bf16.mxu0 0
    %994 = vmatpush1.bf16.msra.mxu0 %v988
    %995 = vmatprep.subr.bf16.mxu0 0
    %996 = vmatpush1.bf16.msra.mxu0 %v990
    %997 = vmatprep.subr.bf16.mxu0 0
    %998 = vmatpush1.bf16.msra.mxu0 0
    %999 = vmatprep.subr.bf16.mxu0 0
    %1000 = vmatpush1.bf16.msra.mxu0 0
    %1001 = vmatprep.subr.bf16.mxu0 0
    %1002 = vmatpush1.bf16.msra.mxu0 0
    %1003 = vmatprep.subr.bf16.mxu0 0
    %1004 = vmatpush1.bf16.msra.mxu0 0
    %1005 = vmatprep.subr.bf16.mxu0 0
    %1006 = vmatpush1.bf16.msra.mxu0 0
    %1007 = vmatprep.subr.bf16.mxu0 0
    %1008 = vmatpush1.bf16.msra.mxu0 0
    %1009 = vmatprep.subr.bf16.mxu0 0
    %1010 = vmatpush1.bf16.msra.mxu0 0
    %1011 = vmatprep.subr.bf16.mxu0 0
    %1012 = vmatpush1.bf16.msra.mxu0 0
    %1013 = vmatprep.subr.bf16.mxu0 0
    %1014 = vmatpush1.bf16.msra.mxu0 0
    %1015 = vmatprep.subr.bf16.mxu0 0
    %1016 = vmatpush1.bf16.msra.mxu0 0
    %1017 = vmatprep.subr.bf16.mxu0 0
    %1018 = vmatpush1.bf16.msra.mxu0 0
    %1019 = vmatprep.subr.bf16.mxu0 0
    %1020 = vmatpush1.bf16.msra.mxu0 0
    %1021 = vmatprep.subr.bf16.mxu0 0
    %1022 = vmatpush1.bf16.msra.mxu0 0
    %1023 = vmatprep.subr.bf16.mxu0 0
    %1024 = vmatpush1.bf16.msra.mxu0 0
    %1025 = vmatprep.mubr.bf16.mxu0 0
    %1026 = vmatmul.mubr.bf16.gmra.mrb[0].mxu0 %v423
    %v1027 = vpop.f32.mrb[0].mxu0
    %v1028 = vadd.f32 0.0, %v1027
    %v1029 = vpop.f32.mrb[0].mxu0
    %v1030 = vpop.f32.mrb[0].mxu0
    %v1031 = vadd.f32 0.0, %v1030
    %v1032 = vpop.f32.mrb[0].mxu0
    %1033 = vmatprep.mubr.bf16.mxu0 0
    %1034 = vmatmul.mubr.bf16.gmra.mrb[0].mxu0 %v426
    %v1035 = vpop.f32.mrb[0].mxu0
    %v1036 = vadd.f32 0.0, %v1035
    %v1037 = vpop.f32.mrb[0].mxu0
    %v1038 = vpop.f32.mrb[0].mxu0
    %v1039 = vadd.f32 0.0, %v1038
    %v1040 = vpop.f32.mrb[0].mxu0
    %1041 = vdwg.mxu0
    %v1042 = vadd.f32 %v983, %v1028
    %v1043 = vadd.f32 %v984, %v1031
    %v1044 = vadd.f32 %v985, %v1036
    %v1045 = vadd.f32 %v986, %v1039
    %1046 = vrot.lane.b32.xlu0 %v865, 64
    %v1047 = vpop.permute.xlu0 %1046
    %1048 = vrot.lane.b32.xlu0 %v866, 64
    %v1049 = vpop.permute.xlu0 %1048
    %1052 = vmatprep.subr.bf16.mxu0 0
    %1053 = vmatpush1.bf16.msra.mxu0 %v1047
    %1054 = vmatprep.subr.bf16.mxu0 0
    %1055 = vmatpush1.bf16.msra.mxu0 %v1049
    %1056 = vmatprep.subr.bf16.mxu0 0
    %1057 = vmatpush1.bf16.msra.mxu0 0
    %1058 = vmatprep.subr.bf16.mxu0 0
    %1059 = vmatpush1.bf16.msra.mxu0 0
    %1060 = vmatprep.subr.bf16.mxu0 0
    %1061 = vmatpush1.bf16.msra.mxu0 0
    %1062 = vmatprep.subr.bf16.mxu0 0
    %1063 = vmatpush1.bf16.msra.mxu0 0
    %1064 = vmatprep.subr.bf16.mxu0 0
    %1065 = vmatpush1.bf16.msra.mxu0 0
    %1066 = vmatprep.subr.bf16.mxu0 0
    %1067 = vmatpush1.bf16.msra.mxu0 0
    %1068 = vmatprep.subr.bf16.mxu0 0
    %1069 = vmatpush1.bf16.msra.mxu0 0
    %1070 = vmatprep.subr.bf16.mxu0 0
    %1071 = vmatpush1.bf16.msra.mxu0 0
    %1072 = vmatprep.subr.bf16.mxu0 0
    %1073 = vmatpush1.bf16.msra.mxu0 0
    %1074 = vmatprep.subr.bf16.mxu0 0
    %1075 = vmatpush1.bf16.msra.mxu0 0
    %1076 = vmatprep.subr.bf16.mxu0 0
    %1077 = vmatpush1.bf16.msra.mxu0 0
    %1078 = vmatprep.subr.bf16.mxu0 0
    %1079 = vmatpush1.bf16.msra.mxu0 0
    %1080 = vmatprep.subr.bf16.mxu0 0
    %1081 = vmatpush1.bf16.msra.mxu0 0
    %1082 = vmatprep.subr.bf16.mxu0 0
    %1083 = vmatpush1.bf16.msra.mxu0 0
    %1084 = vmatprep.mubr.bf16.mxu0 0
    %1085 = vmatmul.mubr.bf16.gmra.mrb[0].mxu0 %v504
    %v1086 = vpop.f32.mrb[0].mxu0
    %v1087 = vadd.f32 0.0, %v1086
    %v1088 = vpop.f32.mrb[0].mxu0
    %v1089 = vpop.f32.mrb[0].mxu0
    %v1090 = vadd.f32 0.0, %v1089
    %v1091 = vpop.f32.mrb[0].mxu0
    %1092 = vmatprep.mubr.bf16.mxu0 0
    %1093 = vmatmul.mubr.bf16.gmra.mrb[0].mxu0 %v507
    %v1094 = vpop.f32.mrb[0].mxu0
    %v1095 = vadd.f32 0.0, %v1094
    %v1096 = vpop.f32.mrb[0].mxu0
    %v1097 = vpop.f32.mrb[0].mxu0
    %v1098 = vadd.f32 0.0, %v1097
    %v1099 = vpop.f32.mrb[0].mxu0
    %1100 = vdwg.mxu0
    %v1101 = vadd.f32 %v1042, %v1087
    %v1102 = vadd.f32 %v1043, %v1090
    %v1103 = vadd.f32 %v1044, %v1095
    %v1104 = vadd.f32 %v1045, %v1098
    %v1105 = vpack.c.bf16 %v1102, %v1101
    %v1106 = vpack.c.bf16 %v1104, %v1103
    %v1107 = vlaneseq
    %v1108 = vshrl.u32 %v1107, 7
    %v1109 = vsub.s32 0, %v1108
    %v1110 = vrot.slane %v75, %v1109
    %1111 = vrot.lane.b32.xlu0 %v590, 96
    %v1112 = vpop.permute.xlu0 %1111
    %1115 = vrot.lane.b32.xlu0 %v1110, 112
    %v1116 = vpop.permute.xlu0 %1115
    %v1119 = vsel %vm96, %v1105, 0
    %v1122 = vsel %vm96, %v1106, 0
    %1124 = vmatprep.subr.bf16.mxu0 0
    %1125 = vmatpush1.bf16.msra.mxu0 %v1112
    %1126 = vmatprep.subr.bf16.mxu0 0
    %1127 = vmatpush1.bf16.msra.mxu0 0
    %1128 = vmatprep.subr.bf16.mxu0 0
    %1129 = vmatpush1.bf16.msra.mxu0 0
    %1130 = vmatprep.subr.bf16.mxu0 0
    %1131 = vmatpush1.bf16.msra.mxu0 0
    %1132 = vmatprep.subr.bf16.mxu0 0
    %1133 = vmatpush1.bf16.msra.mxu0 0
    %1134 = vmatprep.subr.bf16.mxu0 0
    %1135 = vmatpush1.bf16.msra.mxu0 0
    %1136 = vmatprep.subr.bf16.mxu0 0
    %1137 = vmatpush1.bf16.msra.mxu0 0
    %1138 = vmatprep.subr.bf16.mxu0 0
    %1139 = vmatpush1.bf16.msra.mxu0 0
    %1140 = vmatprep.subr.bf16.mxu0 0
    %1141 = vmatpush1.bf16.msra.mxu0 0
    %1142 = vmatprep.subr.bf16.mxu0 0
    %1143 = vmatpush1.bf16.msra.mxu0 0
    %1144 = vmatprep.subr.bf16.mxu0 0
    %1145 = vmatpush1.bf16.msra.mxu0 0
    %1146 = vmatprep.subr.bf16.mxu0 0
    %1147 = vmatpush1.bf16.msra.mxu0 0
    %1148 = vmatprep.subr.bf16.mxu0 0
    %1149 = vmatpush1.bf16.msra.mxu0 0
    %1150 = vmatprep.subr.bf16.mxu0 0
    %1151 = vmatpush1.bf16.msra.mxu0 0
    %1152 = vmatprep.subr.bf16.mxu0 0
    %1153 = vmatpush1.bf16.msra.mxu0 0
    %1154 = vmatprep.subr.bf16.mxu0 0
    %1155 = vmatpush1.bf16.msra.mxu0 0
    %1156 = vmatprep.mubr.bf16.mxu0 0
    %1157 = vmatmul.mubr.bf16.gmra.mrb[0].mxu0 %v1119
    %v1158 = vpop.f32.mrb[0].mxu0
    %v1159 = vadd.f32 %v1116, %v1158
    %v1160 = vpop.f32.mrb[0].mxu0
    %v1161 = vpop.f32.mrb[0].mxu0
    %v1162 = vadd.f32 %v1116, %v1161
    %v1163 = vpop.f32.mrb[0].mxu0
    %1164 = vmatprep.mubr.bf16.mxu0 0
    %1165 = vmatmul.mubr.bf16.gmra.mrb[0].mxu0 %v1122
    %v1166 = vpop.f32.mrb[0].mxu0
    %v1167 = vadd.f32 %v1116, %v1166
    %v1168 = vpop.f32.mrb[0].mxu0
    %v1169 = vpop.f32.mrb[0].mxu0
    %v1170 = vadd.f32 %v1116, %v1169
    %v1171 = vpop.f32.mrb[0].mxu0
    %1172 = vdwg.mxu0
    %v1173 = vmul.f32 %v66, %v779
    %v1174 = vmul.f32 %v67, %v781
    %v1175 = vmul.f32 %v68, %v783
    %v1176 = vmul.f32 %v69, %v785
    %v1177 = vadd.f32 %v1173, 1.0
    %v1178 = vadd.f32 %v1174, 1.0
    %v1179 = vadd.f32 %v1175, 1.0
    %v1180 = vadd.f32 %v1176, 1.0
    %v1181 = vmul.f32 %v1159, %v1177
    %v1182 = vmul.f32 %v1162, %v1178
    %v1183 = vmul.f32 %v1167, %v1179
    %v1184 = vmul.f32 %v1170, %v1180
    %1189 = vrot.lane.b32.xlu0 %v1181, 16
    %v1190 = vpop.permute.xlu0 %1189
    %1191 = vrot.lane.b32.xlu0 %v1182, 16
    %v1192 = vpop.permute.xlu0 %1191
    %1193 = vrot.lane.b32.xlu0 %v1183, 16
    %v1194 = vpop.permute.xlu0 %1193
    %1195 = vrot.lane.b32.xlu0 %v1184, 16
    %v1196 = vpop.permute.xlu0 %1195
    %v1201 = vsel %vm96, %v779, %v1190
    %v1202 = vsel %vm96, %v781, %v1192
    %v1203 = vsel %vm96, %v783, %v1194
    %v1204 = vsel %vm96, %v785, %v1196
    %v1205 = vsel %vm172, %v1201, 0.0
    %v1206 = vsel %vm172, %v1202, 0.0
    %v1207 = vsel %vm172, %v1203, 0.0
    %v1208 = vsel %vm172, %v1204, 0.0
    %1209 = vst [vmem:[#allocation8] sm:$0xff] %v1205
    %1210 = vst [vmem:[#allocation8 + $0x8] sm:$0xff] %v1206
    %1211 = vst [vmem:[#allocation8 + $0x10] sm:$0xff] %v1207
    %1212 = vst [vmem:[#allocation8 + $0x18] sm:$0xff] %v1208
    %v1213 = vpack.c.bf16 %v1182, %v1181
    %v1214 = vpack.c.bf16 %v1184, %v1183
    %1215 = vxpose.xlu0.c.b16.start [1/8] %v1213, 128
    %1216 = vxpose.xlu0.c.b16.cont [2/8] %v1214, 128
    %1217 = vxpose.xlu0.c.b16.cont [3/8] 0, 128
    %1218 = vxpose.xlu0.c.b16.cont [4/8] 0, 128
    %1219 = vxpose.xlu0.c.b16.cont [5/8] 0, 128
    %1220 = vxpose.xlu0.c.b16.cont [6/8] 0, 128
    %1221 = vxpose.xlu0.c.b16.cont [7/8] 0, 128
    %1222 = vxpose.xlu0.c.b16.end [8/8] 0, 128
    %v1223 = vpop.trf.xlu0
    %v1224 = vpop.trf.xlu0
    %v1225 = vpop.trf.xlu0
    %v1226 = vpop.trf.xlu0
    %v1227 = vpop.trf.xlu0
    %v1228 = vpop.trf.xlu0
    %v1229 = vpop.trf.xlu0
    %v1230 = vpop.trf.xlu0
    %v1235 = vunpack.c.l.b16 %v58
    %v1236 = vunpack.c.l.b16 %v59
    %v1237 = vunpack.c.l.b16 %v60
    %v1238 = vunpack.c.l.b16 %v61
    %v1239 = vpack.c.b16 %v1236, %v1235
    %v1240 = vpack.c.b16 %v1238, %v1237
    %v1244 = vsel %vm172, %v1223, 0
    %1246 = vmatprep.subr.bf16.mxu0 0
    %1247 = vmatpush1.bf16.msra.mxu0 %v1239
    %1248 = vmatprep.subr.bf16.mxu0 0
    %1249 = vmatpush1.bf16.msra.mxu0 %v1240
    %1250 = vmatprep.subr.bf16.mxu0 0
    %1251 = vmatpush1.bf16.msra.mxu0 0
    %1252 = vmatprep.subr.bf16.mxu0 0
    %1253 = vmatpush1.bf16.msra.mxu0 0
    %1254 = vmatprep.subr.bf16.mxu0 0
    %1255 = vmatpush1.bf16.msra.mxu0 0
    %1256 = vmatprep.subr.bf16.mxu0 0
    %1257 = vmatpush1.bf16.msra.mxu0 0
    %1258 = vmatprep.subr.bf16.mxu0 0
    %1259 = vmatpush1.bf16.msra.mxu0 0
    %1260 = vmatprep.subr.bf16.mxu0 0
    %1261 = vmatpush1.bf16.msra.mxu0 0
    %1262 = vmatprep.subr.bf16.mxu0 0
    %1263 = vmatpush1.bf16.msra.mxu0 0
    %1264 = vmatprep.subr.bf16.mxu0 0
    %1265 = vmatpush1.bf16.msra.mxu0 0
    %1266 = vmatprep.subr.bf16.mxu0 0
    %1267 = vmatpush1.bf16.msra.mxu0 0
    %1268 = vmatprep.subr.bf16.mxu0 0
    %1269 = vmatpush1.bf16.msra.mxu0 0
    %1270 = vmatprep.subr.bf16.mxu0 0
    %1271 = vmatpush1.bf16.msra.mxu0 0
    %1272 = vmatprep.subr.bf16.mxu0 0
    %1273 = vmatpush1.bf16.msra.mxu0 0
    %1274 = vmatprep.subr.bf16.mxu0 0
    %1275 = vmatpush1.bf16.msra.mxu0 0
    %1276 = vmatprep.subr.bf16.mxu0 0
    %1277 = vmatpush1.bf16.msra.mxu0 0
    %1278 = vmatprep.mubr.bf16.mxu0 0
    %1279 = vmatmul.mubr.bf16.gmra.mrb[0].mxu0 %v1244
    %v1280 = vpop.f32.mrb[0].mxu0
    %v1281 = vadd.f32 0.0, %v1280
    %v1282 = vpop.f32.mrb[0].mxu0
    %v1283 = vpop.f32.mrb[0].mxu0
    %v1284 = vadd.f32 0.0, %v1283
    %v1285 = vpop.f32.mrb[0].mxu0
    %1286 = vdwg.mxu0
    %v1291 = vunpack.c.l.b16 %v62
    %v1292 = vunpack.c.l.b16 %v63
    %v1293 = vunpack.c.l.b16 %v64
    %v1294 = vunpack.c.l.b16 %v65
    %v1295 = vpack.c.b16 %v1292, %v1291
    %v1296 = vpack.c.b16 %v1294, %v1293
    %1299 = vmatprep.subr.bf16.mxu0 0
    %1300 = vmatpush1.bf16.msra.mxu0 %v1295
    %1301 = vmatprep.subr.bf16.mxu0 0
    %1302 = vmatpush1.bf16.msra.mxu0 %v1296
    %1303 = vmatprep.subr.bf16.mxu0 0
    %1304 = vmatpush1.bf16.msra.mxu0 0
    %1305 = vmatprep.subr.bf16.mxu0 0
    %1306 = vmatpush1.bf16.msra.mxu0 0
    %1307 = vmatprep.subr.bf16.mxu0 0
    %1308 = vmatpush1.bf16.msra.mxu0 0
    %1309 = vmatprep.subr.bf16.mxu0 0
    %1310 = vmatpush1.bf16.msra.mxu0 0
    %1311 = vmatprep.subr.bf16.mxu0 0
    %1312 = vmatpush1.bf16.msra.mxu0 0
    %1313 = vmatprep.subr.bf16.mxu0 0
    %1314 = vmatpush1.bf16.msra.mxu0 0
    %1315 = vmatprep.subr.bf16.mxu0 0
    %1316 = vmatpush1.bf16.msra.mxu0 0
    %1317 = vmatprep.subr.bf16.mxu0 0
    %1318 = vmatpush1.bf16.msra.mxu0 0
    %1319 = vmatprep.subr.bf16.mxu0 0
    %1320 = vmatpush1.bf16.msra.mxu0 0
    %1321 = vmatprep.subr.bf16.mxu0 0
    %1322 = vmatpush1.bf16.msra.mxu0 0
    %1323 = vmatprep.subr.bf16.mxu0 0
    %1324 = vmatpush1.bf16.msra.mxu0 0
    %1325 = vmatprep.subr.bf16.mxu0 0
    %1326 = vmatpush1.bf16.msra.mxu0 0
    %1327 = vmatprep.subr.bf16.mxu0 0
    %1328 = vmatpush1.bf16.msra.mxu0 0
    %1329 = vmatprep.subr.bf16.mxu0 0
    %1330 = vmatpush1.bf16.msra.mxu0 0
    %1331 = vmatprep.mubr.bf16.mxu0 0
    %1332 = vmatmul.mubr.bf16.gmra.mrb[0].mxu0 %v1244
    %v1333 = vpop.f32.mrb[0].mxu0
    %v1334 = vadd.f32 0.0, %v1333
    %v1335 = vpop.f32.mrb[0].mxu0
    %v1336 = vpop.f32.mrb[0].mxu0
    %v1337 = vadd.f32 0.0, %v1336
    %v1338 = vpop.f32.mrb[0].mxu0
    %1339 = vdwg.mxu0
    %v1340 = vmul.f32 %v1334, %v1281
    %v1341 = vmul.f32 %v1337, %v1284
    %v1342 = vadd.f32 %v1340, %v1341
    %v1343 = vrot.slane %v1342, 4
    %v1344 = vadd.f32 %v1342, %v1343
    %v1345 = vrot.slane %v1344, 2
    %v1346 = vadd.f32 %v1344, %v1345
    %v1347 = vrot.slane %v1346, 1
    %v1348 = vadd.f32 %v1346, %v1347
    %1349 = vst [vmem:[#allocation7] sm:$0x1] %v1348
    // Predicated region
    $region18: #{tpu_custom_call.1} parent=1 // pred_check
      _
    $region19: #{tpu_custom_call.1} parent=1 // pred_check_branch
      %1351 = sbr.rel (0) target = $region21
    $region20: #{tpu_custom_call.1} parent=1 // pred_region
      %s1353 = ssub.s32 16, 16
      %1354 = vsyncadd [#allocation4], %s1353
      %s1356 = sshll.u32 [#allocation7], 4
      %s1357 = int_to_ptr.vmem [resolvable:$true] %s1356
      %1359 = dma.vmem_to_hbm [thread:$0]  %s1357, 16, %s2, [#allocation4]
    $region21: #{tpu_custom_call.1} parent=1 // pred_fallthru
      _
    // Predicated region
    $region22: #{tpu_custom_call.1} parent=1 // pred_check
      _
    $region23: #{tpu_custom_call.1} parent=1 // pred_check_branch
      %1361 = sbr.rel (0) target = $region25
    $region24: #{tpu_custom_call.1} parent=1 // pred_region
      %s1363 = ssub.s32 512, 512
      %1364 = vsyncadd [#allocation9], %s1363
      %s1365 = sshll.u32 [#allocation8], 4
      %s1366 = int_to_ptr.vmem [resolvable:$true] %s1365
      %1371 = dma.vmem_to_hbm [thread:$0]  %s1366, 512, %s3, [#allocation9], 128, 128, 8
    $region25: #{tpu_custom_call.1} parent=1 // pred_fallthru
      _
    // Predicated region
    $region26: #{tpu_custom_call.1} parent=1 // pred_check
      _
    $region27: #{tpu_custom_call.1} parent=1 // pred_check_branch
      %1373 = sbr.rel (0) target = $region29
    $region28: #{tpu_custom_call.1} parent=1 // pred_region
      %1374 = dma.done [#allocation4], 16
    $region29: #{tpu_custom_call.1} parent=1 // pred_fallthru
      _
    // Predicated region
    $region30: #{tpu_custom_call.1} parent=1 // pred_check
      _
    $region31: #{tpu_custom_call.1} parent=1 // pred_check_branch
      %1376 = sbr.rel (0) target = $region33
    $region32: #{tpu_custom_call.1} parent=1 // pred_region
      %1377 = dma.done [#allocation9], 512
    $region33: #{tpu_custom_call.1} parent=1 // pred_fallthru
      _
    %1378 = vsyncpa [#allocation3], 1
    %1379 = vsyncpa [#allocation6], 1
    %1380 = vsyncpa [#allocation4], 1
    %1381 = vsyncpa [#allocation9], 1

</llo_original>
